<compile_context>
chip_gen: v7x
topology: tpu7x:2x2x1
jax: 0.10.0
libtpu: 0.0.40
codegen_flags: <defaults>
</compile_context>

<pallas_src>
from functools import partial

import jax
import jax.numpy as jnp
from jax import lax
from jax.experimental import pallas as pl
from jax.experimental.pallas import tpu as pltpu


def _self_attn_kernel(x_ref, wqkv_ref, bqkv_ref, o_ref, *, n_heads, flat_out):
    # x_ref: (Bt, S, D); wqkv_ref: (D, 3D) pre-transposed to (in, out);
    # bqkv_ref: (1, 3D); o_ref: (Bt, S*D) if flat_out else (Bt, S, D)
    Bt, S, D = x_ref.shape
    dh = D // n_heads
    scale = 1.0 / (dh ** 0.5)

    # Fused QKV projection over all Bt*S rows in one MXU pass (N = 3D).
    # (S is a multiple of 8 here so this reshape is a free sublane merge.)
    x2 = x_ref[...].reshape(Bt * S, D)
    qkv = jnp.dot(x2, wqkv_ref[...], preferred_element_type=jnp.float32)
    qkv = qkv + bqkv_ref[...]                                     # (Bt*S, 3D)

    q = qkv[:, :D] * scale                                        # scale folded into Q
    k = qkv[:, D:2 * D]
    v = qkv[:, 2 * D:]

    # Contract the last axis of both operands: qs @ ks^T without explicit transpose.
    contract_last = (((1,), (1,)), ((), ()))

    out_blocks = []
    for b in range(Bt):                                           # static loop (small Bt)
        qs_b = q[b * S:(b + 1) * S]                               # (S, D)
        ks_b = k[b * S:(b + 1) * S]
        vs_b = v[b * S:(b + 1) * S]

        head_outs = []
        for h in range(n_heads):                                  # static loop (small H)
            qs = qs_b[:, h * dh:(h + 1) * dh]                     # (S, dh)
            ks = ks_b[:, h * dh:(h + 1) * dh]
            vs = vs_b[:, h * dh:(h + 1) * dh]

            scores = lax.dot_general(qs, ks, contract_last,
                                     preferred_element_type=jnp.float32)  # (S, S)
            # softmax over the key axis (== dim=-2 of 'bsth' in the PyTorch code)
            m = jnp.max(scores, axis=-1, keepdims=True)
            e = jnp.exp(scores - m)
            denom = jnp.sum(e, axis=-1, keepdims=True)
            # TODO(synk): try approx=True (EUP vrcp) if the 1e-5 check still passes.
            w = e * pl.reciprocal(denom, approx=False)

            head_outs.append(jnp.dot(w, vs, preferred_element_type=jnp.float32))

        out_b = head_outs[0] if n_heads == 1 else jnp.concatenate(head_outs, axis=-1)
        out_blocks.append(out_b)                                  # (S, D)

    if flat_out:
        # Single lane-dense store of the whole block: (Bt, S*D) with S*D >= 128 lanes.
        out3 = jnp.stack(out_blocks, axis=0)                      # (Bt, S, D)
        o_ref[...] = out3.reshape(Bt, S * D).astype(o_ref.dtype)
    else:
        # Proven fallback layout: one (S, D) store per batch row.
        for b in range(Bt):
            o_ref[b] = out_blocks[b].astype(o_ref.dtype)


def _tpu_flavor():
    """Return (physical VMEM bytes per TensorCore, TensorCores per chip)."""
    try:
        kind = jax.devices()[0].device_kind.lower()
    except Exception:
        kind = ""
    if "v7" in kind:
        return 64 << 20, 2        # v7x: 64 MiB VMEM per TC, 2 TCs per chip
    return 128 << 20, 1           # v5e / v6e: 128 MiB VMEM, 1 TC


def _work_bytes(block_b, S, D):
    """Rough per-grid-step VMEM working set (f32) for block_b batch rows."""
    tile = block_b * S * D * 4
    return (2 * tile                      # x block, double-buffered
            + 2 * tile                    # out block, double-buffered
            + tile                        # staged (Bt, S*D) output value
            + 2 * D * 3 * D * 4           # fused weight, double-buffered (grid-invariant)
            + 2 * 3 * D * 4               # fused bias, double-buffered
            + block_b * S * 3 * D * 4     # qkv temporary
            + 4 * S * S * 4)              # per-head scores / exp / weights temporaries


def _pick_block_b(B, S, D, budget_bytes, n_cores):
    """Largest batch block that fits the VMEM budget.  Only keeps >=2 grid steps
    when the part has 2 TensorCores (v7x); on v5e/v6e the grid collapses to one
    step so we don't pay per-step overhead on a serial loop."""
    # Output block second-minor dim (block_b) must be a multiple of 8 sublanes
    # or equal to the full batch dim.
    cands = [c for c in range(1, B + 1)
             if B % c == 0 and (c == B or c % 8 == 0)]
    if n_cores > 1 and B >= 2:
        multi = [c for c in cands if B // c >= 2]
        if any(_work_bytes(c, S, D) <= budget_bytes for c in multi):
            cands = multi
    fitting = [c for c in cands if _work_bytes(c, S, D) <= budget_bytes]
    return max(fitting) if fitting else min(cands)


def fuse_qkv_params(wq, bq, wk, bk, wv, bv):
    """Fuse PyTorch-Linear-style (out, in) Q/K/V params into one (D, 3D) weight
    (transposed to (in, out)) and one (1, 3D) bias.  Call ONCE at parameter load
    time, not per forward."""
    wqkv = jnp.concatenate([wq.T, wk.T, wv.T], axis=1)            # (D, 3D)
    bqkv = jnp.concatenate([bq, bk, bv]).reshape(1, -1)           # (1, 3D)
    return wqkv, bqkv


def _build_call(B, S, D, n_heads, block_b, vmem_limit, flat_out):
    kern = partial(_self_attn_kernel, n_heads=n_heads, flat_out=flat_out)
    if flat_out:
        out_shape = jax.ShapeDtypeStruct((B, S * D), jnp.float32)
        out_spec = pl.BlockSpec((block_b, S * D), lambda i: (i, 0))
    else:
        out_shape = jax.ShapeDtypeStruct((B, S, D), jnp.float32)
        out_spec = pl.BlockSpec((block_b, S, D), lambda i: (i, 0, 0))
    return pl.pallas_call(
        kern,
        out_shape=out_shape,
        grid=(B // block_b,),
        in_specs=[
            pl.BlockSpec((block_b, S, D), lambda i: (i, 0, 0)),   # x block
            pl.BlockSpec((D, 3 * D), lambda i: (0, 0)),           # fused Wqkv^T (grid-invariant)
            pl.BlockSpec((1, 3 * D), lambda i: (0, 0)),           # fused bias
        ],
        out_specs=out_spec,
        compiler_params=pltpu.CompilerParams(
            dimension_semantics=("parallel",),
            vmem_limit_bytes=vmem_limit),
    )


def self_attention_fused(x, wqkv, bqkv, *, n_heads=1, block_b=None):
    """x: (B, S, D) f32; wqkv: (D, 3D) pre-fused (in, out) weight; bqkv: (1, 3D)."""
    B, S, D = x.shape
    assert D % n_heads == 0
    assert wqkv.shape == (D, 3 * D) and bqkv.shape == (1, 3 * D)

    vmem_phys, n_cores = _tpu_flavor()
    budget = vmem_phys // 2                                       # headroom vs scoped limit
    if block_b is None:
        block_b = _pick_block_b(B, S, D, budget, n_cores)
    assert B % block_b == 0
    vmem_limit = int(min(3 * vmem_phys // 4,
                         max(2 * _work_bytes(block_b, S, D), 32 << 20)))

    # Only attempt the lane-dense flat output when it would actually be
    # lane-aligned and D itself is not already a lane multiple.
    try_flat = (S * D) % 128 == 0 and D % 128 != 0
    if try_flat:
        try:
            call = _build_call(B, S, D, n_heads, block_b, vmem_limit, flat_out=True)
            out2d = jax.block_until_ready(call(x, wqkv, bqkv))
            return out2d.reshape(B, S, D)
        except Exception:
            pass  # lane-dense flatten not supported by this toolchain; fall back
    call = _build_call(B, S, D, n_heads, block_b, vmem_limit, flat_out=False)
    return call(x, wqkv, bqkv)


def self_attention(x, wq, bq, wk, bk, wv, bv, *, n_heads=1, block_b=None):
    """Convenience wrapper taking PyTorch-Linear-style (out, in) weights.
    Prefer fusing once with fuse_qkv_params() and calling self_attention_fused."""
    wqkv, bqkv = fuse_qkv_params(wq, bq, wk, bk, wv, bv)
    return self_attention_fused(x, wqkv, bqkv, n_heads=n_heads, block_b=block_b)


def _reference(x, wq, bq, wk, bk, wv, bv, n_heads):
    """Pure-JAX port of the PyTorch 3-D branch (ground truth)."""
    B, S, D = x.shape
    xf = x.reshape(B * S, D)
    q = (xf @ wq.T + bq).reshape(B, S, n_heads, D // n_heads)
    k = (xf @ wk.T + bk).reshape(B, S, n_heads, D // n_heads)
    v = (xf @ wv.T + bv).reshape(B, S, n_heads, D // n_heads)
    scores = jnp.einsum('bshd,bthd->bsth', q, k) / (D // n_heads) ** 0.5
    w = jax.nn.softmax(scores, axis=-2)          # softmax over t (keys)
    return jnp.einsum('bsth,bthd->bshd', w, v).reshape(B, S, D)


if __name__ == "__main__":
    B, S, D, H = 2, 8, 32, 2   # small shapes; D divisible by H

    key = jax.random.PRNGKey(0)
    kx, kwq, kwk, kwv, kbq, kbk, kbv = jax.random.split(key, 7)

    x = jax.random.normal(kx, (B, S, D), dtype=jnp.float32)

    # Deterministic PyTorch-Linear-style init: U(-1/sqrt(in), 1/sqrt(in)),
    # weight shape (out_features, in_features), bias shape (out_features,).
    bound = 1.0 / (D ** 0.5)
    wq = jax.random.uniform(kwq, (D, D), jnp.float32, -bound, bound)
    wk = jax.random.uniform(kwk, (D, D), jnp.float32, -bound, bound)
    wv = jax.random.uniform(kwv, (D, D), jnp.float32, -bound, bound)
    bq = jax.random.uniform(kbq, (D,), jnp.float32, -bound, bound)
    bk = jax.random.uniform(kbk, (D,), jnp.float32, -bound, bound)
    bv = jax.random.uniform(kbv, (D,), jnp.float32, -bound, bound)

    # Fuse QKV params ONCE, outside the hot path.
    wqkv, bqkv = fuse_qkv_params(wq, bq, wk, bk, wv, bv)

    out = self_attention_fused(x, wqkv, bqkv, n_heads=H)
    out = jax.block_until_ready(out)

    ref = _reference(x, wq, bq, wk, bk, wv, bv, H)
    assert out.shape == (B, S, D)
    assert jnp.allclose(out, ref, rtol=1e-5, atol=1e-5), \
        f"max abs diff = {jnp.max(jnp.abs(out - ref))}"

    print("KERNEL_OK")
</pallas_src>

<mosaic_0001>
module attributes {stable_mosaic.version = 11 : i64} {
  func.func @_self_attn_kernel(%arg0: i32, %arg1: memref<2x8x32xf32, #tpu.memory_space<vmem>>, %arg2: memref<32x96xf32, #tpu.memory_space<vmem>>, %arg3: memref<1x96xf32, #tpu.memory_space<vmem>>, %arg4: memref<2x256xf32, #tpu.memory_space<vmem>>) attributes {dimension_semantics = [#tpu.dimension_semantics<parallel>], iteration_bounds = array<i64: 1>, scalar_prefetch = 0 : i64, scratch_operands = 0 : i64, tpu.core_type = #tpu.core_type<tc>, window_params = [{transform_indices = @transform_0, window_bounds = array<i64: 2, 8, 32>}, {pipeline_mode = #tpu.pipeline_mode<synchronous>, transform_indices = @transform_1, window_bounds = array<i64: 32, 96>}, {pipeline_mode = #tpu.pipeline_mode<synchronous>, transform_indices = @transform_2, window_bounds = array<i64: 1, 96>}, {transform_indices = @transform_3, window_bounds = array<i64: 2, 256>}]} {
    %c0 = arith.constant 0 : index
    %c0_0 = arith.constant 0 : index
    %c0_1 = arith.constant 0 : index
    %0 = vector.load %arg1[%c0, %c0_0, %c0_1] : memref<2x8x32xf32, #tpu.memory_space<vmem>>, vector<2x8x32xf32>
    %1 = vector.shape_cast %0 : vector<2x8x32xf32> to vector<16x32xf32>
    %c0_2 = arith.constant 0 : index
    %c0_3 = arith.constant 0 : index
    %2 = vector.load %arg2[%c0_2, %c0_3] : memref<32x96xf32, #tpu.memory_space<vmem>>, vector<32x96xf32>
    %cst = arith.constant dense<0.000000e+00> : vector<16x96xf32>
    %3 = tpu.matmul %1, %2, %cst {dimension_numbers = #tpu.dot_dimension_numbers<[1], [0], [0], [1], [0, 0, 1, 1], [], []>} : vector<16x32xf32>, vector<32x96xf32>, vector<16x96xf32> -> vector<16x96xf32>
    %c0_4 = arith.constant 0 : index
    %c0_5 = arith.constant 0 : index
    %4 = vector.load %arg3[%c0_4, %c0_5] : memref<1x96xf32, #tpu.memory_space<vmem>>, vector<1x96xf32>
    %5 = vector.broadcast %4 : vector<1x96xf32> to vector<16x96xf32>
    %6 = arith.addf %3, %5 : vector<16x96xf32>
    %7 = vector.extract_strided_slice %6 {offsets = [0, 0], sizes = [16, 32], strides = [1, 1]} : vector<16x96xf32> to vector<16x32xf32>
    %cst_6 = arith.constant 2.500000e-01 : f32
    %8 = vector.broadcast %cst_6 : f32 to vector<16x32xf32>
    %9 = arith.mulf %7, %8 : vector<16x32xf32>
    %10 = vector.extract_strided_slice %6 {offsets = [0, 32], sizes = [16, 32], strides = [1, 1]} : vector<16x96xf32> to vector<16x32xf32>
    %11 = vector.extract_strided_slice %6 {offsets = [0, 64], sizes = [16, 32], strides = [1, 1]} : vector<16x96xf32> to vector<16x32xf32>
    %12 = vector.extract_strided_slice %9 {offsets = [0, 0], sizes = [8, 32], strides = [1, 1]} : vector<16x32xf32> to vector<8x32xf32>
    %13 = vector.extract_strided_slice %10 {offsets = [0, 0], sizes = [8, 32], strides = [1, 1]} : vector<16x32xf32> to vector<8x32xf32>
    %14 = vector.extract_strided_slice %11 {offsets = [0, 0], sizes = [8, 32], strides = [1, 1]} : vector<16x32xf32> to vector<8x32xf32>
    %15 = vector.extract_strided_slice %12 {offsets = [0, 0], sizes = [8, 16], strides = [1, 1]} : vector<8x32xf32> to vector<8x16xf32>
    %16 = vector.extract_strided_slice %13 {offsets = [0, 0], sizes = [8, 16], strides = [1, 1]} : vector<8x32xf32> to vector<8x16xf32>
    %17 = vector.extract_strided_slice %14 {offsets = [0, 0], sizes = [8, 16], strides = [1, 1]} : vector<8x32xf32> to vector<8x16xf32>
    %cst_7 = arith.constant dense<0.000000e+00> : vector<8x8xf32>
    %18 = tpu.matmul %15, %16, %cst_7 {dimension_numbers = #tpu.dot_dimension_numbers<[1], [1], [0], [0], [0, 0, 1, 0], [], []>} : vector<8x16xf32>, vector<8x16xf32>, vector<8x8xf32> -> vector<8x8xf32>
    %cst_8 = arith.constant dense<0xFF800000> : vector<8xf32>
    %19 = vector.multi_reduction <maximumf>, %18, %cst_8 [1] : vector<8x8xf32> to vector<8xf32>
    %20 = vector.shape_cast %19 : vector<8xf32> to vector<8x1xf32>
    %21 = vector.broadcast %20 : vector<8x1xf32> to vector<8x8xf32>
    %22 = arith.subf %18, %21 : vector<8x8xf32>
    %23 = math.exp %22 : vector<8x8xf32>
    %cst_9 = arith.constant dense<0.000000e+00> : vector<8xf32>
    %24 = vector.multi_reduction <add>, %23, %cst_9 [1] : vector<8x8xf32> to vector<8xf32>
    %25 = vector.shape_cast %24 : vector<8xf32> to vector<8x1xf32>
    %26 = tpu.reciprocal %25 : vector<8x1xf32> -> vector<8x1xf32>
    %27 = vector.broadcast %26 : vector<8x1xf32> to vector<8x8xf32>
    %28 = arith.mulf %23, %27 : vector<8x8xf32>
    %cst_10 = arith.constant dense<0.000000e+00> : vector<8x16xf32>
    %29 = tpu.matmul %28, %17, %cst_10 {dimension_numbers = #tpu.dot_dimension_numbers<[1], [0], [0], [1], [0, 0, 1, 1], [], []>} : vector<8x8xf32>, vector<8x16xf32>, vector<8x16xf32> -> vector<8x16xf32>
    %30 = vector.extract_strided_slice %12 {offsets = [0, 16], sizes = [8, 16], strides = [1, 1]} : vector<8x32xf32> to vector<8x16xf32>
    %31 = vector.extract_strided_slice %13 {offsets = [0, 16], sizes = [8, 16], strides = [1, 1]} : vector<8x32xf32> to vector<8x16xf32>
    %32 = vector.extract_strided_slice %14 {offsets = [0, 16], sizes = [8, 16], strides = [1, 1]} : vector<8x32xf32> to vector<8x16xf32>
    %cst_11 = arith.constant dense<0.000000e+00> : vector<8x8xf32>
    %33 = tpu.matmul %30, %31, %cst_11 {dimension_numbers = #tpu.dot_dimension_numbers<[1], [1], [0], [0], [0, 0, 1, 0], [], []>} : vector<8x16xf32>, vector<8x16xf32>, vector<8x8xf32> -> vector<8x8xf32>
    %cst_12 = arith.constant dense<0xFF800000> : vector<8xf32>
    %34 = vector.multi_reduction <maximumf>, %33, %cst_12 [1] : vector<8x8xf32> to vector<8xf32>
    %35 = vector.shape_cast %34 : vector<8xf32> to vector<8x1xf32>
    %36 = vector.broadcast %35 : vector<8x1xf32> to vector<8x8xf32>
    %37 = arith.subf %33, %36 : vector<8x8xf32>
    %38 = math.exp %37 : vector<8x8xf32>
    %cst_13 = arith.constant dense<0.000000e+00> : vector<8xf32>
    %39 = vector.multi_reduction <add>, %38, %cst_13 [1] : vector<8x8xf32> to vector<8xf32>
    %40 = vector.shape_cast %39 : vector<8xf32> to vector<8x1xf32>
    %41 = tpu.reciprocal %40 : vector<8x1xf32> -> vector<8x1xf32>
    %42 = vector.broadcast %41 : vector<8x1xf32> to vector<8x8xf32>
    %43 = arith.mulf %38, %42 : vector<8x8xf32>
    %cst_14 = arith.constant dense<0.000000e+00> : vector<8x16xf32>
    %44 = tpu.matmul %43, %32, %cst_14 {dimension_numbers = #tpu.dot_dimension_numbers<[1], [0], [0], [1], [0, 0, 1, 1], [], []>} : vector<8x8xf32>, vector<8x16xf32>, vector<8x16xf32> -> vector<8x16xf32>
    %45 = tpu.concatenate %29, %44 in 1 : vector<8x16xf32>, vector<8x16xf32> -> vector<8x32xf32>
    %46 = vector.extract_strided_slice %9 {offsets = [8, 0], sizes = [8, 32], strides = [1, 1]} : vector<16x32xf32> to vector<8x32xf32>
    %47 = vector.extract_strided_slice %10 {offsets = [8, 0], sizes = [8, 32], strides = [1, 1]} : vector<16x32xf32> to vector<8x32xf32>
    %48 = vector.extract_strided_slice %11 {offsets = [8, 0], sizes = [8, 32], strides = [1, 1]} : vector<16x32xf32> to vector<8x32xf32>
    %49 = vector.extract_strided_slice %46 {offsets = [0, 0], sizes = [8, 16], strides = [1, 1]} : vector<8x32xf32> to vector<8x16xf32>
    %50 = vector.extract_strided_slice %47 {offsets = [0, 0], sizes = [8, 16], strides = [1, 1]} : vector<8x32xf32> to vector<8x16xf32>
    %51 = vector.extract_strided_slice %48 {offsets = [0, 0], sizes = [8, 16], strides = [1, 1]} : vector<8x32xf32> to vector<8x16xf32>
    %cst_15 = arith.constant dense<0.000000e+00> : vector<8x8xf32>
    %52 = tpu.matmul %49, %50, %cst_15 {dimension_numbers = #tpu.dot_dimension_numbers<[1], [1], [0], [0], [0, 0, 1, 0], [], []>} : vector<8x16xf32>, vector<8x16xf32>, vector<8x8xf32> -> vector<8x8xf32>
    %cst_16 = arith.constant dense<0xFF800000> : vector<8xf32>
    %53 = vector.multi_reduction <maximumf>, %52, %cst_16 [1] : vector<8x8xf32> to vector<8xf32>
    %54 = vector.shape_cast %53 : vector<8xf32> to vector<8x1xf32>
    %55 = vector.broadcast %54 : vector<8x1xf32> to vector<8x8xf32>
    %56 = arith.subf %52, %55 : vector<8x8xf32>
    %57 = math.exp %56 : vector<8x8xf32>
    %cst_17 = arith.constant dense<0.000000e+00> : vector<8xf32>
    %58 = vector.multi_reduction <add>, %57, %cst_17 [1] : vector<8x8xf32> to vector<8xf32>
    %59 = vector.shape_cast %58 : vector<8xf32> to vector<8x1xf32>
    %60 = tpu.reciprocal %59 : vector<8x1xf32> -> vector<8x1xf32>
    %61 = vector.broadcast %60 : vector<8x1xf32> to vector<8x8xf32>
    %62 = arith.mulf %57, %61 : vector<8x8xf32>
    %cst_18 = arith.constant dense<0.000000e+00> : vector<8x16xf32>
    %63 = tpu.matmul %62, %51, %cst_18 {dimension_numbers = #tpu.dot_dimension_numbers<[1], [0], [0], [1], [0, 0, 1, 1], [], []>} : vector<8x8xf32>, vector<8x16xf32>, vector<8x16xf32> -> vector<8x16xf32>
    %64 = vector.extract_strided_slice %46 {offsets = [0, 16], sizes = [8, 16], strides = [1, 1]} : vector<8x32xf32> to vector<8x16xf32>
    %65 = vector.extract_strided_slice %47 {offsets = [0, 16], sizes = [8, 16], strides = [1, 1]} : vector<8x32xf32> to vector<8x16xf32>
    %66 = vector.extract_strided_slice %48 {offsets = [0, 16], sizes = [8, 16], strides = [1, 1]} : vector<8x32xf32> to vector<8x16xf32>
    %cst_19 = arith.constant dense<0.000000e+00> : vector<8x8xf32>
    %67 = tpu.matmul %64, %65, %cst_19 {dimension_numbers = #tpu.dot_dimension_numbers<[1], [1], [0], [0], [0, 0, 1, 0], [], []>} : vector<8x16xf32>, vector<8x16xf32>, vector<8x8xf32> -> vector<8x8xf32>
    %cst_20 = arith.constant dense<0xFF800000> : vector<8xf32>
    %68 = vector.multi_reduction <maximumf>, %67, %cst_20 [1] : vector<8x8xf32> to vector<8xf32>
    %69 = vector.shape_cast %68 : vector<8xf32> to vector<8x1xf32>
    %70 = vector.broadcast %69 : vector<8x1xf32> to vector<8x8xf32>
    %71 = arith.subf %67, %70 : vector<8x8xf32>
    %72 = math.exp %71 : vector<8x8xf32>
    %cst_21 = arith.constant dense<0.000000e+00> : vector<8xf32>
    %73 = vector.multi_reduction <add>, %72, %cst_21 [1] : vector<8x8xf32> to vector<8xf32>
    %74 = vector.shape_cast %73 : vector<8xf32> to vector<8x1xf32>
    %75 = tpu.reciprocal %74 : vector<8x1xf32> -> vector<8x1xf32>
    %76 = vector.broadcast %75 : vector<8x1xf32> to vector<8x8xf32>
    %77 = arith.mulf %72, %76 : vector<8x8xf32>
    %cst_22 = arith.constant dense<0.000000e+00> : vector<8x16xf32>
    %78 = tpu.matmul %77, %66, %cst_22 {dimension_numbers = #tpu.dot_dimension_numbers<[1], [0], [0], [1], [0, 0, 1, 1], [], []>} : vector<8x8xf32>, vector<8x16xf32>, vector<8x16xf32> -> vector<8x16xf32>
    %79 = tpu.concatenate %63, %78 in 1 : vector<8x16xf32>, vector<8x16xf32> -> vector<8x32xf32>
    %80 = vector.shape_cast %45 : vector<8x32xf32> to vector<1x8x32xf32>
    %81 = vector.shape_cast %79 : vector<8x32xf32> to vector<1x8x32xf32>
    %82 = tpu.concatenate %80, %81 in 0 : vector<1x8x32xf32>, vector<1x8x32xf32> -> vector<2x8x32xf32>
    %83 = vector.shape_cast %82 : vector<2x8x32xf32> to vector<2x256xf32>
    %c0_23 = arith.constant 0 : index
    %c0_24 = arith.constant 0 : index
    %84 = vector.load %arg4[%c0_23, %c0_24] : memref<2x256xf32, #tpu.memory_space<vmem>>, vector<2x256xf32>
    tpu.vector_store %arg4[%c0_23, %c0_24], %83 {strides = array<i32>} : memref<2x256xf32, #tpu.memory_space<vmem>>, vector<2x256xf32>,
    return
  }
  func.func @transform_0(%arg0: i32) -> (i32, i32, i32) {
    %c0_i32 = arith.constant 0 : i32
    %c0_i32_0 = arith.constant 0 : i32
    %c0_i32_1 = arith.constant 0 : i32
    return %arg0, %c0_i32, %c0_i32_0 : i32, i32, i32
  }
  func.func @transform_1(%arg0: i32) -> (i32, i32) {
    %c0_i32 = arith.constant 0 : i32
    %c0_i32_0 = arith.constant 0 : i32
    %c0_i32_1 = arith.constant 0 : i32
    return %c0_i32, %c0_i32_0 : i32, i32
  }
  func.func @transform_2(%arg0: i32) -> (i32, i32) {
    %c0_i32 = arith.constant 0 : i32
    %c0_i32_0 = arith.constant 0 : i32
    %c0_i32_1 = arith.constant 0 : i32
    return %c0_i32, %c0_i32_0 : i32, i32
  }
  func.func @transform_3(%arg0: i32) -> (i32, i32) {
    %c0_i32 = arith.constant 0 : i32
    %c0_i32_0 = arith.constant 0 : i32
    return %arg0, %c0_i32 : i32, i32
  }
}

module attributes {stable_mosaic.version = 11 : i64} {
  func.func @_self_attn_kernel(%arg0: i32, %arg1: memref<2x8x32xf32, #tpu.memory_space<vmem>>, %arg2: memref<32x96xf32, #tpu.memory_space<vmem>>, %arg3: memref<1x96xf32, #tpu.memory_space<vmem>>, %arg4: memref<2x8x32xf32, #tpu.memory_space<vmem>>) attributes {dimension_semantics = [#tpu.dimension_semantics<parallel>], iteration_bounds = array<i64: 1>, scalar_prefetch = 0 : i64, scratch_operands = 0 : i64, tpu.core_type = #tpu.core_type<tc>, window_params = [{transform_indices = @transform_0, window_bounds = array<i64: 2, 8, 32>}, {pipeline_mode = #tpu.pipeline_mode<synchronous>, transform_indices = @transform_1, window_bounds = array<i64: 32, 96>}, {pipeline_mode = #tpu.pipeline_mode<synchronous>, transform_indices = @transform_2, window_bounds = array<i64: 1, 96>}, {transform_indices = @transform_3, window_bounds = array<i64: 2, 8, 32>}]} {
    %c0 = arith.constant 0 : index
    %c0_0 = arith.constant 0 : index
    %c0_1 = arith.constant 0 : index
    %0 = vector.load %arg1[%c0, %c0_0, %c0_1] : memref<2x8x32xf32, #tpu.memory_space<vmem>>, vector<2x8x32xf32>
    %1 = vector.shape_cast %0 : vector<2x8x32xf32> to vector<16x32xf32>
    %c0_2 = arith.constant 0 : index
    %c0_3 = arith.constant 0 : index
    %2 = vector.load %arg2[%c0_2, %c0_3] : memref<32x96xf32, #tpu.memory_space<vmem>>, vector<32x96xf32>
    %cst = arith.constant dense<0.000000e+00> : vector<16x96xf32>
    %3 = tpu.matmul %1, %2, %cst {dimension_numbers = #tpu.dot_dimension_numbers<[1], [0], [0], [1], [0, 0, 1, 1], [], []>} : vector<16x32xf32>, vector<32x96xf32>, vector<16x96xf32> -> vector<16x96xf32>
    %c0_4 = arith.constant 0 : index
    %c0_5 = arith.constant 0 : index
    %4 = vector.load %arg3[%c0_4, %c0_5] : memref<1x96xf32, #tpu.memory_space<vmem>>, vector<1x96xf32>
    %5 = vector.broadcast %4 : vector<1x96xf32> to vector<16x96xf32>
    %6 = arith.addf %3, %5 : vector<16x96xf32>
    %7 = vector.extract_strided_slice %6 {offsets = [0, 0], sizes = [16, 32], strides = [1, 1]} : vector<16x96xf32> to vector<16x32xf32>
    %cst_6 = arith.constant 2.500000e-01 : f32
    %8 = vector.broadcast %cst_6 : f32 to vector<16x32xf32>
    %9 = arith.mulf %7, %8 : vector<16x32xf32>
    %10 = vector.extract_strided_slice %6 {offsets = [0, 32], sizes = [16, 32], strides = [1, 1]} : vector<16x96xf32> to vector<16x32xf32>
    %11 = vector.extract_strided_slice %6 {offsets = [0, 64], sizes = [16, 32], strides = [1, 1]} : vector<16x96xf32> to vector<16x32xf32>
    %12 = vector.extract_strided_slice %9 {offsets = [0, 0], sizes = [8, 32], strides = [1, 1]} : vector<16x32xf32> to vector<8x32xf32>
    %13 = vector.extract_strided_slice %10 {offsets = [0, 0], sizes = [8, 32], strides = [1, 1]} : vector<16x32xf32> to vector<8x32xf32>
    %14 = vector.extract_strided_slice %11 {offsets = [0, 0], sizes = [8, 32], strides = [1, 1]} : vector<16x32xf32> to vector<8x32xf32>
    %15 = vector.extract_strided_slice %12 {offsets = [0, 0], sizes = [8, 16], strides = [1, 1]} : vector<8x32xf32> to vector<8x16xf32>
    %16 = vector.extract_strided_slice %13 {offsets = [0, 0], sizes = [8, 16], strides = [1, 1]} : vector<8x32xf32> to vector<8x16xf32>
    %17 = vector.extract_strided_slice %14 {offsets = [0, 0], sizes = [8, 16], strides = [1, 1]} : vector<8x32xf32> to vector<8x16xf32>
    %cst_7 = arith.constant dense<0.000000e+00> : vector<8x8xf32>
    %18 = tpu.matmul %15, %16, %cst_7 {dimension_numbers = #tpu.dot_dimension_numbers<[1], [1], [0], [0], [0, 0, 1, 0], [], []>} : vector<8x16xf32>, vector<8x16xf32>, vector<8x8xf32> -> vector<8x8xf32>
    %cst_8 = arith.constant dense<0xFF800000> : vector<8xf32>
    %19 = vector.multi_reduction <maximumf>, %18, %cst_8 [1] : vector<8x8xf32> to vector<8xf32>
    %20 = vector.shape_cast %19 : vector<8xf32> to vector<8x1xf32>
    %21 = vector.broadcast %20 : vector<8x1xf32> to vector<8x8xf32>
    %22 = arith.subf %18, %21 : vector<8x8xf32>
    %23 = math.exp %22 : vector<8x8xf32>
    %cst_9 = arith.constant dense<0.000000e+00> : vector<8xf32>
    %24 = vector.multi_reduction <add>, %23, %cst_9 [1] : vector<8x8xf32> to vector<8xf32>
    %25 = vector.shape_cast %24 : vector<8xf32> to vector<8x1xf32>
    %26 = tpu.reciprocal %25 : vector<8x1xf32> -> vector<8x1xf32>
    %27 = vector.broadcast %26 : vector<8x1xf32> to vector<8x8xf32>
    %28 = arith.mulf %23, %27 : vector<8x8xf32>
    %cst_10 = arith.constant dense<0.000000e+00> : vector<8x16xf32>
    %29 = tpu.matmul %28, %17, %cst_10 {dimension_numbers = #tpu.dot_dimension_numbers<[1], [0], [0], [1], [0, 0, 1, 1], [], []>} : vector<8x8xf32>, vector<8x16xf32>, vector<8x16xf32> -> vector<8x16xf32>
    %30 = vector.extract_strided_slice %12 {offsets = [0, 16], sizes = [8, 16], strides = [1, 1]} : vector<8x32xf32> to vector<8x16xf32>
    %31 = vector.extract_strided_slice %13 {offsets = [0, 16], sizes = [8, 16], strides = [1, 1]} : vector<8x32xf32> to vector<8x16xf32>
    %32 = vector.extract_strided_slice %14 {offsets = [0, 16], sizes = [8, 16], strides = [1, 1]} : vector<8x32xf32> to vector<8x16xf32>
    %cst_11 = arith.constant dense<0.000000e+00> : vector<8x8xf32>
    %33 = tpu.matmul %30, %31, %cst_11 {dimension_numbers = #tpu.dot_dimension_numbers<[1], [1], [0], [0], [0, 0, 1, 0], [], []>} : vector<8x16xf32>, vector<8x16xf32>, vector<8x8xf32> -> vector<8x8xf32>
    %cst_12 = arith.constant dense<0xFF800000> : vector<8xf32>
    %34 = vector.multi_reduction <maximumf>, %33, %cst_12 [1] : vector<8x8xf32> to vector<8xf32>
    %35 = vector.shape_cast %34 : vector<8xf32> to vector<8x1xf32>
    %36 = vector.broadcast %35 : vector<8x1xf32> to vector<8x8xf32>
    %37 = arith.subf %33, %36 : vector<8x8xf32>
    %38 = math.exp %37 : vector<8x8xf32>
    %cst_13 = arith.constant dense<0.000000e+00> : vector<8xf32>
    %39 = vector.multi_reduction <add>, %38, %cst_13 [1] : vector<8x8xf32> to vector<8xf32>
    %40 = vector.shape_cast %39 : vector<8xf32> to vector<8x1xf32>
    %41 = tpu.reciprocal %40 : vector<8x1xf32> -> vector<8x1xf32>
    %42 = vector.broadcast %41 : vector<8x1xf32> to vector<8x8xf32>
    %43 = arith.mulf %38, %42 : vector<8x8xf32>
    %cst_14 = arith.constant dense<0.000000e+00> : vector<8x16xf32>
    %44 = tpu.matmul %43, %32, %cst_14 {dimension_numbers = #tpu.dot_dimension_numbers<[1], [0], [0], [1], [0, 0, 1, 1], [], []>} : vector<8x8xf32>, vector<8x16xf32>, vector<8x16xf32> -> vector<8x16xf32>
    %45 = tpu.concatenate %29, %44 in 1 : vector<8x16xf32>, vector<8x16xf32> -> vector<8x32xf32>
    %46 = vector.extract_strided_slice %9 {offsets = [8, 0], sizes = [8, 32], strides = [1, 1]} : vector<16x32xf32> to vector<8x32xf32>
    %47 = vector.extract_strided_slice %10 {offsets = [8, 0], sizes = [8, 32], strides = [1, 1]} : vector<16x32xf32> to vector<8x32xf32>
    %48 = vector.extract_strided_slice %11 {offsets = [8, 0], sizes = [8, 32], strides = [1, 1]} : vector<16x32xf32> to vector<8x32xf32>
    %49 = vector.extract_strided_slice %46 {offsets = [0, 0], sizes = [8, 16], strides = [1, 1]} : vector<8x32xf32> to vector<8x16xf32>
    %50 = vector.extract_strided_slice %47 {offsets = [0, 0], sizes = [8, 16], strides = [1, 1]} : vector<8x32xf32> to vector<8x16xf32>
    %51 = vector.extract_strided_slice %48 {offsets = [0, 0], sizes = [8, 16], strides = [1, 1]} : vector<8x32xf32> to vector<8x16xf32>
    %cst_15 = arith.constant dense<0.000000e+00> : vector<8x8xf32>
    %52 = tpu.matmul %49, %50, %cst_15 {dimension_numbers = #tpu.dot_dimension_numbers<[1], [1], [0], [0], [0, 0, 1, 0], [], []>} : vector<8x16xf32>, vector<8x16xf32>, vector<8x8xf32> -> vector<8x8xf32>
    %cst_16 = arith.constant dense<0xFF800000> : vector<8xf32>
    %53 = vector.multi_reduction <maximumf>, %52, %cst_16 [1] : vector<8x8xf32> to vector<8xf32>
    %54 = vector.shape_cast %53 : vector<8xf32> to vector<8x1xf32>
    %55 = vector.broadcast %54 : vector<8x1xf32> to vector<8x8xf32>
    %56 = arith.subf %52, %55 : vector<8x8xf32>
    %57 = math.exp %56 : vector<8x8xf32>
    %cst_17 = arith.constant dense<0.000000e+00> : vector<8xf32>
    %58 = vector.multi_reduction <add>, %57, %cst_17 [1] : vector<8x8xf32> to vector<8xf32>
    %59 = vector.shape_cast %58 : vector<8xf32> to vector<8x1xf32>
    %60 = tpu.reciprocal %59 : vector<8x1xf32> -> vector<8x1xf32>
    %61 = vector.broadcast %60 : vector<8x1xf32> to vector<8x8xf32>
    %62 = arith.mulf %57, %61 : vector<8x8xf32>
    %cst_18 = arith.constant dense<0.000000e+00> : vector<8x16xf32>
    %63 = tpu.matmul %62, %51, %cst_18 {dimension_numbers = #tpu.dot_dimension_numbers<[1], [0], [0], [1], [0, 0, 1, 1], [], []>} : vector<8x8xf32>, vector<8x16xf32>, vector<8x16xf32> -> vector<8x16xf32>
    %64 = vector.extract_strided_slice %46 {offsets = [0, 16], sizes = [8, 16], strides = [1, 1]} : vector<8x32xf32> to vector<8x16xf32>
    %65 = vector.extract_strided_slice %47 {offsets = [0, 16], sizes = [8, 16], strides = [1, 1]} : vector<8x32xf32> to vector<8x16xf32>
    %66 = vector.extract_strided_slice %48 {offsets = [0, 16], sizes = [8, 16], strides = [1, 1]} : vector<8x32xf32> to vector<8x16xf32>
    %cst_19 = arith.constant dense<0.000000e+00> : vector<8x8xf32>
    %67 = tpu.matmul %64, %65, %cst_19 {dimension_numbers = #tpu.dot_dimension_numbers<[1], [1], [0], [0], [0, 0, 1, 0], [], []>} : vector<8x16xf32>, vector<8x16xf32>, vector<8x8xf32> -> vector<8x8xf32>
    %cst_20 = arith.constant dense<0xFF800000> : vector<8xf32>
    %68 = vector.multi_reduction <maximumf>, %67, %cst_20 [1] : vector<8x8xf32> to vector<8xf32>
    %69 = vector.shape_cast %68 : vector<8xf32> to vector<8x1xf32>
    %70 = vector.broadcast %69 : vector<8x1xf32> to vector<8x8xf32>
    %71 = arith.subf %67, %70 : vector<8x8xf32>
    %72 = math.exp %71 : vector<8x8xf32>
    %cst_21 = arith.constant dense<0.000000e+00> : vector<8xf32>
    %73 = vector.multi_reduction <add>, %72, %cst_21 [1] : vector<8x8xf32> to vector<8xf32>
    %74 = vector.shape_cast %73 : vector<8xf32> to vector<8x1xf32>
    %75 = tpu.reciprocal %74 : vector<8x1xf32> -> vector<8x1xf32>
    %76 = vector.broadcast %75 : vector<8x1xf32> to vector<8x8xf32>
    %77 = arith.mulf %72, %76 : vector<8x8xf32>
    %cst_22 = arith.constant dense<0.000000e+00> : vector<8x16xf32>
    %78 = tpu.matmul %77, %66, %cst_22 {dimension_numbers = #tpu.dot_dimension_numbers<[1], [0], [0], [1], [0, 0, 1, 1], [], []>} : vector<8x8xf32>, vector<8x16xf32>, vector<8x16xf32> -> vector<8x16xf32>
    %79 = tpu.concatenate %63, %78 in 1 : vector<8x16xf32>, vector<8x16xf32> -> vector<8x32xf32>
    %c0_23 = arith.constant 0 : index
    %c0_24 = arith.constant 0 : index
    %c0_25 = arith.constant 0 : index
    %80 = vector.load %arg4[%c0_23, %c0_24, %c0_25] : memref<2x8x32xf32, #tpu.memory_space<vmem>>, vector<1x8x32xf32>
    %81 = vector.shape_cast %80 : vector<1x8x32xf32> to vector<8x32xf32>
    %82 = vector.shape_cast %45 : vector<8x32xf32> to vector<1x8x32xf32>
    tpu.vector_store %arg4[%c0_23, %c0_24, %c0_25], %82 {strides = array<i32>} : memref<2x8x32xf32, #tpu.memory_space<vmem>>, vector<1x8x32xf32>,
    %c1 = arith.constant 1 : index
    %c0_26 = arith.constant 0 : index
    %c0_27 = arith.constant 0 : index
    %83 = vector.load %arg4[%c1, %c0_26, %c0_27] : memref<2x8x32xf32, #tpu.memory_space<vmem>>, vector<1x8x32xf32>
    %84 = vector.shape_cast %83 : vector<1x8x32xf32> to vector<8x32xf32>
    %85 = vector.shape_cast %79 : vector<8x32xf32> to vector<1x8x32xf32>
    tpu.vector_store %arg4[%c1, %c0_26, %c0_27], %85 {strides = array<i32>} : memref<2x8x32xf32, #tpu.memory_space<vmem>>, vector<1x8x32xf32>,
    return
  }
  func.func @transform_0(%arg0: i32) -> (i32, i32, i32) {
    %c0_i32 = arith.constant 0 : i32
    %c0_i32_0 = arith.constant 0 : i32
    %c0_i32_1 = arith.constant 0 : i32
    return %arg0, %c0_i32, %c0_i32_0 : i32, i32, i32
  }
  func.func @transform_1(%arg0: i32) -> (i32, i32) {
    %c0_i32 = arith.constant 0 : i32
    %c0_i32_0 = arith.constant 0 : i32
    %c0_i32_1 = arith.constant 0 : i32
    return %c0_i32, %c0_i32_0 : i32, i32
  }
  func.func @transform_2(%arg0: i32) -> (i32, i32) {
    %c0_i32 = arith.constant 0 : i32
    %c0_i32_0 = arith.constant 0 : i32
    %c0_i32_1 = arith.constant 0 : i32
    return %c0_i32, %c0_i32_0 : i32, i32
  }
  func.func @transform_3(%arg0: i32) -> (i32, i32, i32) {
    %c0_i32 = arith.constant 0 : i32
    %c0_i32_0 = arith.constant 0 : i32
    %c0_i32_1 = arith.constant 0 : i32
    return %arg0, %c0_i32, %c0_i32_0 : i32, i32, i32
  }
}

</mosaic_0001>

<llo_original>
// kernel: tpu_custom_call.1
$region0: #{tpu_custom_call.1}
  #allocation0 [shape = 'u32[]', space=smem, size = 0x4, offset = 0x4, fixed_abs, tag = 'smem constant byte address 0x4 - core index']
  #allocation1 [shape = 'u32[144,128]{1,0:T(1,128)}', space=vmem, size = 0x12000, scoped, tag = 'internal scratch']
  %s0 = inlined_call_operand.hbm [shape: f32[2,8,32], index: 0, kind: input, shape index: {}]
  %s1 = inlined_call_operand.hbm [shape: f32[32,96], index: 1, kind: input, shape index: {}]
  %s2 = inlined_call_operand.vmem [shape: f32[1,96], index: 2, kind: input, shape index: {}]
  %s3 = inlined_call_operand.hbm [shape: f32[2,256], index: 3, kind: output, shape index: {}]
  %s4 = sld [smem:[#allocation0]]
  $region30: #{tpu_custom_call.1} parent=0
    _
  %s6 = ssub.s32 1, %s4
  %s7 = scalar_select 0, %s6, %s4
  $region1: #{tpu_custom_call.1} parent=0
    #allocation2 [shape = 'u8[8192]{0}', space=vmem, size = 0x2000, scoped, tag = 'input window, operand 0, single buffered']
    #allocation3 [shape = 's32[1]{0}', space=sflag, size = 0x4, scoped, tag = 'scoped memory for tpu_custom_call.1']
    #allocation4 [shape = 's32[1]{0}', space=sflag, size = 0x4, scoped, tag = 'scoped memory for tpu_custom_call.1']
    #allocation5 [shape = 'u8[16384]{0}', space=vmem, size = 0x4000, scoped, tag = 'input window, operand 1, single buffered']
    #allocation6 [shape = 's32[1]{0}', space=sflag, size = 0x4, scoped, tag = 'scoped memory for tpu_custom_call.1']
    #allocation7 [shape = 'u8[2048]{0}', space=vmem, size = 0x800, scoped, tag = 'output window, operand 0, single buffered']
    %8 = vsyncpa [#allocation3], 0
    %9 = vsyncpa [#allocation6], 0
    %10 = vsyncpa [#allocation4], 0
    // Predicated region
    $region2: #{tpu_custom_call.1} parent=1 // pred_check
      _
    $region3: #{tpu_custom_call.1} parent=1 // pred_check_branch
      %12 = sbr.rel (0) target = $region5
    $region4: #{tpu_custom_call.1} parent=1 // pred_region
      %s14 = ssub.s32 256, 256
      %15 = vsyncadd [#allocation3], %s14
      %s16 = sshll.u32 [#allocation2], 4
      %s17 = int_to_ptr.vmem [resolvable:$true] %s16
      %22 = dma.hbm_to_vmem [thread:$0]  %s0, 256, %s17, [#allocation3], 128, 128, 8
    $region5: #{tpu_custom_call.1} parent=1 // pred_fallthru
      _
    // Predicated region
    $region6: #{tpu_custom_call.1} parent=1 // pred_check
      _
    $region7: #{tpu_custom_call.1} parent=1 // pred_check_branch
      %24 = sbr.rel (0) target = $region9
    $region8: #{tpu_custom_call.1} parent=1 // pred_region
      %s26 = ssub.s32 512, 512
      %27 = vsyncadd [#allocation6], %s26
      %s28 = sshll.u32 [#allocation5], 4
      %s29 = int_to_ptr.vmem [resolvable:$true] %s28
      %34 = dma.hbm_to_vmem [thread:$0]  %s1, 512, %s29, [#allocation6], 128, 128, 8
    $region9: #{tpu_custom_call.1} parent=1 // pred_fallthru
      _
    // Predicated region
    $region10: #{tpu_custom_call.1} parent=1 // pred_check
      _
    $region11: #{tpu_custom_call.1} parent=1 // pred_check_branch
      %36 = sbr.rel (0) target = $region13
    $region12: #{tpu_custom_call.1} parent=1 // pred_region
      _
    $region13: #{tpu_custom_call.1} parent=1 // pred_fallthru
      _
    // Predicated region
    $region14: #{tpu_custom_call.1} parent=1 // pred_check
      _
    $region15: #{tpu_custom_call.1} parent=1 // pred_check_branch
      %38 = sbr.rel (0) target = $region17
    $region16: #{tpu_custom_call.1} parent=1 // pred_region
      %39 = dma.done [#allocation3], 256
    $region17: #{tpu_custom_call.1} parent=1 // pred_fallthru
      _
    // Predicated region
    $region18: #{tpu_custom_call.1} parent=1 // pred_check
      _
    $region19: #{tpu_custom_call.1} parent=1 // pred_check_branch
      %41 = sbr.rel (0) target = $region21
    $region20: #{tpu_custom_call.1} parent=1 // pred_region
      %42 = dma.done [#allocation6], 512
    $region21: #{tpu_custom_call.1} parent=1 // pred_fallthru
      _
    %v43 = vld [vmem:[#allocation2] sm:$0xff]
    %v44 = vld [vmem:[#allocation2 + $0x8] sm:$0xff]
    %v45 = vld [vmem:[#allocation5] sm:$0xff]
    %v46 = vld [vmem:[#allocation5 + $0x8] sm:$0xff]
    %v47 = vld [vmem:[#allocation5 + $0x10] sm:$0xff]
    %v48 = vld [vmem:[#allocation5 + $0x18] sm:$0xff]
    %v49 = vld [vmem:[%s2] sm:$0x1]
    %v51 = vlaneseq
    %v52 = vshrl.u32 %v51, 7
    %v53 = vsub.s32 0, %v52
    %v54 = vrot.slane %v49, %v53
    %vm56 = vcmask 261120
    %v58 = vsel %vm56, %v43, 0
    %v61 = vsel %vm56, %v44, 0
    %63 = vmatprep.subr.mxu0 0.0
    %64 = vmatpush1.msra.mxu0 %v45
    %65 = vmatprep.subr.mxu0 0.0
    %66 = vmatpush1.msra.mxu0 %v46
    %67 = vmatprep.subr.mxu0 0.0
    %68 = vmatpush1.msra.mxu0 %v47
    %69 = vmatprep.subr.mxu0 0.0
    %70 = vmatpush1.msra.mxu0 %v48
    %71 = vmatprep.subr.mxu0 0.0
    %72 = vmatpush1.msra.mxu0 0.0
    %73 = vmatprep.subr.mxu0 0.0
    %74 = vmatpush1.msra.mxu0 0.0
    %75 = vmatprep.subr.mxu0 0.0
    %76 = vmatpush1.msra.mxu0 0.0
    %77 = vmatprep.subr.mxu0 0.0
    %78 = vmatpush1.msra.mxu0 0.0
    %79 = vmatprep.subr.mxu0 0.0
    %80 = vmatpush1.msra.mxu0 0.0
    %81 = vmatprep.subr.mxu0 0.0
    %82 = vmatpush1.msra.mxu0 0.0
    %83 = vmatprep.subr.mxu0 0.0
    %84 = vmatpush1.msra.mxu0 0.0
    %85 = vmatprep.subr.mxu0 0.0
    %86 = vmatpush1.msra.mxu0 0.0
    %87 = vmatprep.subr.mxu0 0.0
    %88 = vmatpush1.msra.mxu0 0.0
    %89 = vmatprep.subr.mxu0 0.0
    %90 = vmatpush1.msra.mxu0 0.0
    %91 = vmatprep.subr.mxu0 0.0
    %92 = vmatpush1.msra.mxu0 0.0
    %93 = vmatprep.subr.mxu0 0.0
    %94 = vmatpush1.msra.mxu0 0.0
    %95 = vmatprep.subr.mxu0 0.0
    %96 = vmatpush1.msra.mxu0 0.0
    %97 = vmatprep.subr.mxu0 0.0
    %98 = vmatpush1.msra.mxu0 0.0
    %99 = vmatprep.subr.mxu0 0.0
    %100 = vmatpush1.msra.mxu0 0.0
    %101 = vmatprep.subr.mxu0 0.0
    %102 = vmatpush1.msra.mxu0 0.0
    %103 = vmatprep.subr.mxu0 0.0
    %104 = vmatpush1.msra.mxu0 0.0
    %105 = vmatprep.subr.mxu0 0.0
    %106 = vmatpush1.msra.mxu0 0.0
    %107 = vmatprep.subr.mxu0 0.0
    %108 = vmatpush1.msra.mxu0 0.0
    %109 = vmatprep.subr.mxu0 0.0
    %110 = vmatpush1.msra.mxu0 0.0
    %111 = vmatprep.subr.mxu0 0.0
    %112 = vmatpush1.msra.mxu0 0.0
    %113 = vmatprep.subr.mxu0 0.0
    %114 = vmatpush1.msra.mxu0 0.0
    %115 = vmatprep.subr.mxu0 0.0
    %116 = vmatpush1.msra.mxu0 0.0
    %117 = vmatprep.subr.mxu0 0.0
    %118 = vmatpush1.msra.mxu0 0.0
    %119 = vmatprep.subr.mxu0 0.0
    %120 = vmatpush1.msra.mxu0 0.0
    %121 = vmatprep.subr.mxu0 0.0
    %122 = vmatpush1.msra.mxu0 0.0
    %123 = vmatprep.subr.mxu0 0.0
    %124 = vmatpush1.msra.mxu0 0.0
    %125 = vmatprep.subr.mxu0 0.0
    %126 = vmatpush1.msra.mxu0 0.0
    %127 = vmatprep.mubr.f32.mxu0 0.0
    %128 = vmatmul.mubr.f32.gmra.mrb[0].mxu0 %v58
    %v129 = vpop.f32.mrb[0].mxu0
    %v130 = vadd.f32 %v54, %v129
    %v131 = vpop.f32.mrb[0].mxu0
    %132 = vmatprep.mubr.f32.mxu0 0.0
    %133 = vmatmul.mubr.f32.gmra.mrb[0].mxu0 %v61
    %v134 = vpop.f32.mrb[0].mxu0
    %v135 = vadd.f32 %v54, %v134
    %v136 = vpop.f32.mrb[0].mxu0
    %137 = vdwg.mxu0
    %v138 = vmul.f32 %v130, 0.25
    %v139 = vmul.f32 %v135, 0.25
    %141 = vrot.lane.b32.xlu0 %v130, 96
    %v142 = vpop.permute.xlu0 %141
    %vm143 = vcmask 130048
    %v145 = vsel %vm143, %v138, 0
    %v147 = vsel %vm143, %v142, 0
    %149 = vmatprep.subr.mxu0 0.0
    %150 = vmatpush1.xpose.msra.mxu0 %v147
    %151 = vmatprep.subr.mxu0 0.0
    %152 = vmatpush1.xpose.msra.mxu0 0.0
    %153 = vmatprep.subr.mxu0 0.0
    %154 = vmatpush1.xpose.msra.mxu0 0.0
    %155 = vmatprep.subr.mxu0 0.0
    %156 = vmatpush1.xpose.msra.mxu0 0.0
    %157 = vmatprep.subr.mxu0 0.0
    %158 = vmatpush1.xpose.msra.mxu0 0.0
    %159 = vmatprep.subr.mxu0 0.0
    %160 = vmatpush1.xpose.msra.mxu0 0.0
    %161 = vmatprep.subr.mxu0 0.0
    %162 = vmatpush1.xpose.msra.mxu0 0.0
    %163 = vmatprep.subr.mxu0 0.0
    %164 = vmatpush1.xpose.msra.mxu0 0.0
    %165 = vmatprep.subr.mxu0 0.0
    %166 = vmatpush1.xpose.msra.mxu0 0.0
    %167 = vmatprep.subr.mxu0 0.0
    %168 = vmatpush1.xpose.msra.mxu0 0.0
    %169 = vmatprep.subr.mxu0 0.0
    %170 = vmatpush1.xpose.msra.mxu0 0.0
    %171 = vmatprep.subr.mxu0 0.0
    %172 = vmatpush1.xpose.msra.mxu0 0.0
    %173 = vmatprep.subr.mxu0 0.0
    %174 = vmatpush1.xpose.msra.mxu0 0.0
    %175 = vmatprep.subr.mxu0 0.0
    %176 = vmatpush1.xpose.msra.mxu0 0.0
    %177 = vmatprep.subr.mxu0 0.0
    %178 = vmatpush1.xpose.msra.mxu0 0.0
    %179 = vmatprep.subr.mxu0 0.0
    %180 = vmatpush1.xpose.msra.mxu0 0.0
    %181 = vmatprep.subr.mxu0 0.0
    %182 = vmatpush1.xpose.msra.mxu0 0.0
    %183 = vmatprep.subr.mxu0 0.0
    %184 = vmatpush1.xpose.msra.mxu0 0.0
    %185 = vmatprep.subr.mxu0 0.0
    %186 = vmatpush1.xpose.msra.mxu0 0.0
    %187 = vmatprep.subr.mxu0 0.0
    %188 = vmatpush1.xpose.msra.mxu0 0.0
    %189 = vmatprep.subr.mxu0 0.0
    %190 = vmatpush1.xpose.msra.mxu0 0.0
    %191 = vmatprep.subr.mxu0 0.0
    %192 = vmatpush1.xpose.msra.mxu0 0.0
    %193 = vmatprep.subr.mxu0 0.0
    %194 = vmatpush1.xpose.msra.mxu0 0.0
    %195 = vmatprep.subr.mxu0 0.0
    %196 = vmatpush1.xpose.msra.mxu0 0.0
    %197 = vmatprep.subr.mxu0 0.0
    %198 = vmatpush1.xpose.msra.mxu0 0.0
    %199 = vmatprep.subr.mxu0 0.0
    %200 = vmatpush1.xpose.msra.mxu0 0.0
    %201 = vmatprep.subr.mxu0 0.0
    %202 = vmatpush1.xpose.msra.mxu0 0.0
    %203 = vmatprep.subr.mxu0 0.0
    %204 = vmatpush1.xpose.msra.mxu0 0.0
    %205 = vmatprep.subr.mxu0 0.0
    %206 = vmatpush1.xpose.msra.mxu0 0.0
    %207 = vmatprep.subr.mxu0 0.0
    %208 = vmatpush1.xpose.msra.mxu0 0.0
    %209 = vmatprep.subr.mxu0 0.0
    %210 = vmatpush1.xpose.msra.mxu0 0.0
    %211 = vmatprep.subr.mxu0 0.0
    %212 = vmatpush1.xpose.msra.mxu0 0.0
    %213 = vmatprep.mubr.f32.mxu0 0.0
    %214 = vmatmul.mubr.f32.gmra.mrb[0].mxu0 %v145
    %v215 = vpop.f32.mrb[0].mxu0
    %v216 = vadd.f32 0.0, %v215
    %v217 = vpop.f32.mrb[0].mxu0
    %218 = vdwg.mxu0
    %vm219 = vcmask 64512
    %v220 = vsel %vm219, %v216, -inf
    %221 = vmax.xlane.f32.xlu0 %v220
    %v222 = vpop.xlane.xlu0 %221
    %v223 = vsub.f32 %v216, %v222
    %v224 = vmul.f32 %v223, 1.442695
    %v225 = vpow.pop %v224
    %v226 = vsel %vm219, %v225, 0.0
    %227 = vadd.xlane.f32.xlu0 %v226
    %v228 = vpop.xlane.xlu0 %227
    %v229 = vrcp.pop %v228
    %v230 = vmul.f32 %v225, %v229
    %231 = vrot.lane.b32.xlu0 %v130, 64
    %v232 = vpop.permute.xlu0 %231
    %v235 = vsel %vm219, %v230, 0
    %237 = vmatprep.subr.mxu0 0.0
    %238 = vmatpush1.msra.mxu0 %v232
    %239 = vmatprep.subr.mxu0 0.0
    %240 = vmatpush1.msra.mxu0 0.0
    %241 = vmatprep.subr.mxu0 0.0
    %242 = vmatpush1.msra.mxu0 0.0
    %243 = vmatprep.subr.mxu0 0.0
    %244 = vmatpush1.msra.mxu0 0.0
    %245 = vmatprep.subr.mxu0 0.0
    %246 = vmatpush1.msra.mxu0 0.0
    %247 = vmatprep.subr.mxu0 0.0
    %248 = vmatpush1.msra.mxu0 0.0
    %249 = vmatprep.subr.mxu0 0.0
    %250 = vmatpush1.msra.mxu0 0.0
    %251 = vmatprep.subr.mxu0 0.0
    %252 = vmatpush1.msra.mxu0 0.0
    %253 = vmatprep.subr.mxu0 0.0
    %254 = vmatpush1.msra.mxu0 0.0
    %255 = vmatprep.subr.mxu0 0.0
    %256 = vmatpush1.msra.mxu0 0.0
    %257 = vmatprep.subr.mxu0 0.0
    %258 = vmatpush1.msra.mxu0 0.0
    %259 = vmatprep.subr.mxu0 0.0
    %260 = vmatpush1.msra.mxu0 0.0
    %261 = vmatprep.subr.mxu0 0.0
    %262 = vmatpush1.msra.mxu0 0.0
    %263 = vmatprep.subr.mxu0 0.0
    %264 = vmatpush1.msra.mxu0 0.0
    %265 = vmatprep.subr.mxu0 0.0
    %266 = vmatpush1.msra.mxu0 0.0
    %267 = vmatprep.subr.mxu0 0.0
    %268 = vmatpush1.msra.mxu0 0.0
    %269 = vmatprep.subr.mxu0 0.0
    %270 = vmatpush1.msra.mxu0 0.0
    %271 = vmatprep.subr.mxu0 0.0
    %272 = vmatpush1.msra.mxu0 0.0
    %273 = vmatprep.subr.mxu0 0.0
    %274 = vmatpush1.msra.mxu0 0.0
    %275 = vmatprep.subr.mxu0 0.0
    %276 = vmatpush1.msra.mxu0 0.0
    %277 = vmatprep.subr.mxu0 0.0
    %278 = vmatpush1.msra.mxu0 0.0
    %279 = vmatprep.subr.mxu0 0.0
    %280 = vmatpush1.msra.mxu0 0.0
    %281 = vmatprep.subr.mxu0 0.0
    %282 = vmatpush1.msra.mxu0 0.0
    %283 = vmatprep.subr.mxu0 0.0
    %284 = vmatpush1.msra.mxu0 0.0
    %285 = vmatprep.subr.mxu0 0.0
    %286 = vmatpush1.msra.mxu0 0.0
    %287 = vmatprep.subr.mxu0 0.0
    %288 = vmatpush1.msra.mxu0 0.0
    %289 = vmatprep.subr.mxu0 0.0
    %290 = vmatpush1.msra.mxu0 0.0
    %291 = vmatprep.subr.mxu0 0.0
    %292 = vmatpush1.msra.mxu0 0.0
    %293 = vmatprep.subr.mxu0 0.0
    %294 = vmatpush1.msra.mxu0 0.0
    %295 = vmatprep.subr.mxu0 0.0
    %296 = vmatpush1.msra.mxu0 0.0
    %297 = vmatprep.subr.mxu0 0.0
    %298 = vmatpush1.msra.mxu0 0.0
    %299 = vmatprep.subr.mxu0 0.0
    %300 = vmatpush1.msra.mxu0 0.0
    %301 = vmatprep.mubr.f32.mxu0 0.0
    %302 = vmatmul.mubr.f32.gmra.mrb[0].mxu0 %v235
    %v303 = vpop.f32.mrb[0].mxu0
    %v304 = vadd.f32 0.0, %v303
    %v305 = vpop.f32.mrb[0].mxu0
    %306 = vdwg.mxu0
    %307 = vrot.lane.b32.xlu0 %v138, 112
    %v308 = vpop.permute.xlu0 %307
    %309 = vrot.lane.b32.xlu0 %v130, 80
    %v310 = vpop.permute.xlu0 %309
    %v311 = vsel %vm143, %v308, 0
    %v313 = vsel %vm143, %v310, 0
    %315 = vmatprep.subr.mxu0 0.0
    %316 = vmatpush1.xpose.msra.mxu0 %v313
    %317 = vmatprep.subr.mxu0 0.0
    %318 = vmatpush1.xpose.msra.mxu0 0.0
    %319 = vmatprep.subr.mxu0 0.0
    %320 = vmatpush1.xpose.msra.mxu0 0.0
    %321 = vmatprep.subr.mxu0 0.0
    %322 = vmatpush1.xpose.msra.mxu0 0.0
    %323 = vmatprep.subr.mxu0 0.0
    %324 = vmatpush1.xpose.msra.mxu0 0.0
    %325 = vmatprep.subr.mxu0 0.0
    %326 = vmatpush1.xpose.msra.mxu0 0.0
    %327 = vmatprep.subr.mxu0 0.0
    %328 = vmatpush1.xpose.msra.mxu0 0.0
    %329 = vmatprep.subr.mxu0 0.0
    %330 = vmatpush1.xpose.msra.mxu0 0.0
    %331 = vmatprep.subr.mxu0 0.0
    %332 = vmatpush1.xpose.msra.mxu0 0.0
    %333 = vmatprep.subr.mxu0 0.0
    %334 = vmatpush1.xpose.msra.mxu0 0.0
    %335 = vmatprep.subr.mxu0 0.0
    %336 = vmatpush1.xpose.msra.mxu0 0.0
    %337 = vmatprep.subr.mxu0 0.0
    %338 = vmatpush1.xpose.msra.mxu0 0.0
    %339 = vmatprep.subr.mxu0 0.0
    %340 = vmatpush1.xpose.msra.mxu0 0.0
    %341 = vmatprep.subr.mxu0 0.0
    %342 = vmatpush1.xpose.msra.mxu0 0.0
    %343 = vmatprep.subr.mxu0 0.0
    %344 = vmatpush1.xpose.msra.mxu0 0.0
    %345 = vmatprep.subr.mxu0 0.0
    %346 = vmatpush1.xpose.msra.mxu0 0.0
    %347 = vmatprep.subr.mxu0 0.0
    %348 = vmatpush1.xpose.msra.mxu0 0.0
    %349 = vmatprep.subr.mxu0 0.0
    %350 = vmatpush1.xpose.msra.mxu0 0.0
    %351 = vmatprep.subr.mxu0 0.0
    %352 = vmatpush1.xpose.msra.mxu0 0.0
    %353 = vmatprep.subr.mxu0 0.0
    %354 = vmatpush1.xpose.msra.mxu0 0.0
    %355 = vmatprep.subr.mxu0 0.0
    %356 = vmatpush1.xpose.msra.mxu0 0.0
    %357 = vmatprep.subr.mxu0 0.0
    %358 = vmatpush1.xpose.msra.mxu0 0.0
    %359 = vmatprep.subr.mxu0 0.0
    %360 = vmatpush1.xpose.msra.mxu0 0.0
    %361 = vmatprep.subr.mxu0 0.0
    %362 = vmatpush1.xpose.msra.mxu0 0.0
    %363 = vmatprep.subr.mxu0 0.0
    %364 = vmatpush1.xpose.msra.mxu0 0.0
    %365 = vmatprep.subr.mxu0 0.0
    %366 = vmatpush1.xpose.msra.mxu0 0.0
    %367 = vmatprep.subr.mxu0 0.0
    %368 = vmatpush1.xpose.msra.mxu0 0.0
    %369 = vmatprep.subr.mxu0 0.0
    %370 = vmatpush1.xpose.msra.mxu0 0.0
    %371 = vmatprep.subr.mxu0 0.0
    %372 = vmatpush1.xpose.msra.mxu0 0.0
    %373 = vmatprep.subr.mxu0 0.0
    %374 = vmatpush1.xpose.msra.mxu0 0.0
    %375 = vmatprep.subr.mxu0 0.0
    %376 = vmatpush1.xpose.msra.mxu0 0.0
    %377 = vmatprep.subr.mxu0 0.0
    %378 = vmatpush1.xpose.msra.mxu0 0.0
    %379 = vmatprep.mubr.f32.mxu0 0.0
    %380 = vmatmul.mubr.f32.gmra.mrb[0].mxu0 %v311
    %v381 = vpop.f32.mrb[0].mxu0
    %v382 = vadd.f32 0.0, %v381
    %v383 = vpop.f32.mrb[0].mxu0
    %384 = vdwg.mxu0
    %v385 = vsel %vm219, %v382, -inf
    %386 = vmax.xlane.f32.xlu0 %v385
    %v387 = vpop.xlane.xlu0 %386
    %v388 = vsub.f32 %v382, %v387
    %v389 = vmul.f32 %v388, 1.442695
    %v390 = vpow.pop %v389
    %v391 = vsel %vm219, %v390, 0.0
    %392 = vadd.xlane.f32.xlu0 %v391
    %v393 = vpop.xlane.xlu0 %392
    %v394 = vrcp.pop %v393
    %v395 = vmul.f32 %v390, %v394
    %396 = vrot.lane.b32.xlu0 %v130, 48
    %v397 = vpop.permute.xlu0 %396
    %v400 = vsel %vm219, %v395, 0
    %402 = vmatprep.subr.mxu0 0.0
    %403 = vmatpush1.msra.mxu0 %v397
    %404 = vmatprep.subr.mxu0 0.0
    %405 = vmatpush1.msra.mxu0 0.0
    %406 = vmatprep.subr.mxu0 0.0
    %407 = vmatpush1.msra.mxu0 0.0
    %408 = vmatprep.subr.mxu0 0.0
    %409 = vmatpush1.msra.mxu0 0.0
    %410 = vmatprep.subr.mxu0 0.0
    %411 = vmatpush1.msra.mxu0 0.0
    %412 = vmatprep.subr.mxu0 0.0
    %413 = vmatpush1.msra.mxu0 0.0
    %414 = vmatprep.subr.mxu0 0.0
    %415 = vmatpush1.msra.mxu0 0.0
    %416 = vmatprep.subr.mxu0 0.0
    %417 = vmatpush1.msra.mxu0 0.0
    %418 = vmatprep.subr.mxu0 0.0
    %419 = vmatpush1.msra.mxu0 0.0
    %420 = vmatprep.subr.mxu0 0.0
    %421 = vmatpush1.msra.mxu0 0.0
    %422 = vmatprep.subr.mxu0 0.0
    %423 = vmatpush1.msra.mxu0 0.0
    %424 = vmatprep.subr.mxu0 0.0
    %425 = vmatpush1.msra.mxu0 0.0
    %426 = vmatprep.subr.mxu0 0.0
    %427 = vmatpush1.msra.mxu0 0.0
    %428 = vmatprep.subr.mxu0 0.0
    %429 = vmatpush1.msra.mxu0 0.0
    %430 = vmatprep.subr.mxu0 0.0
    %431 = vmatpush1.msra.mxu0 0.0
    %432 = vmatprep.subr.mxu0 0.0
    %433 = vmatpush1.msra.mxu0 0.0
    %434 = vmatprep.subr.mxu0 0.0
    %435 = vmatpush1.msra.mxu0 0.0
    %436 = vmatprep.subr.mxu0 0.0
    %437 = vmatpush1.msra.mxu0 0.0
    %438 = vmatprep.subr.mxu0 0.0
    %439 = vmatpush1.msra.mxu0 0.0
    %440 = vmatprep.subr.mxu0 0.0
    %441 = vmatpush1.msra.mxu0 0.0
    %442 = vmatprep.subr.mxu0 0.0
    %443 = vmatpush1.msra.mxu0 0.0
    %444 = vmatprep.subr.mxu0 0.0
    %445 = vmatpush1.msra.mxu0 0.0
    %446 = vmatprep.subr.mxu0 0.0
    %447 = vmatpush1.msra.mxu0 0.0
    %448 = vmatprep.subr.mxu0 0.0
    %449 = vmatpush1.msra.mxu0 0.0
    %450 = vmatprep.subr.mxu0 0.0
    %451 = vmatpush1.msra.mxu0 0.0
    %452 = vmatprep.subr.mxu0 0.0
    %453 = vmatpush1.msra.mxu0 0.0
    %454 = vmatprep.subr.mxu0 0.0
    %455 = vmatpush1.msra.mxu0 0.0
    %456 = vmatprep.subr.mxu0 0.0
    %457 = vmatpush1.msra.mxu0 0.0
    %458 = vmatprep.subr.mxu0 0.0
    %459 = vmatpush1.msra.mxu0 0.0
    %460 = vmatprep.subr.mxu0 0.0
    %461 = vmatpush1.msra.mxu0 0.0
    %462 = vmatprep.subr.mxu0 0.0
    %463 = vmatpush1.msra.mxu0 0.0
    %464 = vmatprep.subr.mxu0 0.0
    %465 = vmatpush1.msra.mxu0 0.0
    %466 = vmatprep.mubr.f32.mxu0 0.0
    %467 = vmatmul.mubr.f32.gmra.mrb[0].mxu0 %v400
    %v468 = vpop.f32.mrb[0].mxu0
    %v469 = vadd.f32 0.0, %v468
    %v470 = vpop.f32.mrb[0].mxu0
    %471 = vdwg.mxu0
    %473 = vrot.lane.b32.xlu0 %v469, 16
    %v474 = vpop.permute.xlu0 %473
    %v476 = vsel %vm143, %v304, %v474
    %478 = vrot.lane.b32.xlu0 %v135, 96
    %v479 = vpop.permute.xlu0 %478
    %v481 = vsel %vm143, %v139, 0
    %v483 = vsel %vm143, %v479, 0
    %485 = vmatprep.subr.mxu0 0.0
    %486 = vmatpush1.xpose.msra.mxu0 %v483
    %487 = vmatprep.subr.mxu0 0.0
    %488 = vmatpush1.xpose.msra.mxu0 0.0
    %489 = vmatprep.subr.mxu0 0.0
    %490 = vmatpush1.xpose.msra.mxu0 0.0
    %491 = vmatprep.subr.mxu0 0.0
    %492 = vmatpush1.xpose.msra.mxu0 0.0
    %493 = vmatprep.subr.mxu0 0.0
    %494 = vmatpush1.xpose.msra.mxu0 0.0
    %495 = vmatprep.subr.mxu0 0.0
    %496 = vmatpush1.xpose.msra.mxu0 0.0
    %497 = vmatprep.subr.mxu0 0.0
    %498 = vmatpush1.xpose.msra.mxu0 0.0
    %499 = vmatprep.subr.mxu0 0.0
    %500 = vmatpush1.xpose.msra.mxu0 0.0
    %501 = vmatprep.subr.mxu0 0.0
    %502 = vmatpush1.xpose.msra.mxu0 0.0
    %503 = vmatprep.subr.mxu0 0.0
    %504 = vmatpush1.xpose.msra.mxu0 0.0
    %505 = vmatprep.subr.mxu0 0.0
    %506 = vmatpush1.xpose.msra.mxu0 0.0
    %507 = vmatprep.subr.mxu0 0.0
    %508 = vmatpush1.xpose.msra.mxu0 0.0
    %509 = vmatprep.subr.mxu0 0.0
    %510 = vmatpush1.xpose.msra.mxu0 0.0
    %511 = vmatprep.subr.mxu0 0.0
    %512 = vmatpush1.xpose.msra.mxu0 0.0
    %513 = vmatprep.subr.mxu0 0.0
    %514 = vmatpush1.xpose.msra.mxu0 0.0
    %515 = vmatprep.subr.mxu0 0.0
    %516 = vmatpush1.xpose.msra.mxu0 0.0
    %517 = vmatprep.subr.mxu0 0.0
    %518 = vmatpush1.xpose.msra.mxu0 0.0
    %519 = vmatprep.subr.mxu0 0.0
    %520 = vmatpush1.xpose.msra.mxu0 0.0
    %521 = vmatprep.subr.mxu0 0.0
    %522 = vmatpush1.xpose.msra.mxu0 0.0
    %523 = vmatprep.subr.mxu0 0.0
    %524 = vmatpush1.xpose.msra.mxu0 0.0
    %525 = vmatprep.subr.mxu0 0.0
    %526 = vmatpush1.xpose.msra.mxu0 0.0
    %527 = vmatprep.subr.mxu0 0.0
    %528 = vmatpush1.xpose.msra.mxu0 0.0
    %529 = vmatprep.subr.mxu0 0.0
    %530 = vmatpush1.xpose.msra.mxu0 0.0
    %531 = vmatprep.subr.mxu0 0.0
    %532 = vmatpush1.xpose.msra.mxu0 0.0
    %533 = vmatprep.subr.mxu0 0.0
    %534 = vmatpush1.xpose.msra.mxu0 0.0
    %535 = vmatprep.subr.mxu0 0.0
    %536 = vmatpush1.xpose.msra.mxu0 0.0
    %537 = vmatprep.subr.mxu0 0.0
    %538 = vmatpush1.xpose.msra.mxu0 0.0
    %539 = vmatprep.subr.mxu0 0.0
    %540 = vmatpush1.xpose.msra.mxu0 0.0
    %541 = vmatprep.subr.mxu0 0.0
    %542 = vmatpush1.xpose.msra.mxu0 0.0
    %543 = vmatprep.subr.mxu0 0.0
    %544 = vmatpush1.xpose.msra.mxu0 0.0
    %545 = vmatprep.subr.mxu0 0.0
    %546 = vmatpush1.xpose.msra.mxu0 0.0
    %547 = vmatprep.subr.mxu0 0.0
    %548 = vmatpush1.xpose.msra.mxu0 0.0
    %549 = vmatprep.mubr.f32.mxu0 0.0
    %550 = vmatmul.mubr.f32.gmra.mrb[0].mxu0 %v481
    %v551 = vpop.f32.mrb[0].mxu0
    %v552 = vadd.f32 0.0, %v551
    %v553 = vpop.f32.mrb[0].mxu0
    %554 = vdwg.mxu0
    %v555 = vsel %vm219, %v552, -inf
    %556 = vmax.xlane.f32.xlu0 %v555
    %v557 = vpop.xlane.xlu0 %556
    %v558 = vsub.f32 %v552, %v557
    %v559 = vmul.f32 %v558, 1.442695
    %v560 = vpow.pop %v559
    %v561 = vsel %vm219, %v560, 0.0
    %562 = vadd.xlane.f32.xlu0 %v561
    %v563 = vpop.xlane.xlu0 %562
    %v564 = vrcp.pop %v563
    %v565 = vmul.f32 %v560, %v564
    %566 = vrot.lane.b32.xlu0 %v135, 64
    %v567 = vpop.permute.xlu0 %566
    %v570 = vsel %vm219, %v565, 0
    %572 = vmatprep.subr.mxu0 0.0
    %573 = vmatpush1.msra.mxu0 %v567
    %574 = vmatprep.subr.mxu0 0.0
    %575 = vmatpush1.msra.mxu0 0.0
    %576 = vmatprep.subr.mxu0 0.0
    %577 = vmatpush1.msra.mxu0 0.0
    %578 = vmatprep.subr.mxu0 0.0
    %579 = vmatpush1.msra.mxu0 0.0
    %580 = vmatprep.subr.mxu0 0.0
    %581 = vmatpush1.msra.mxu0 0.0
    %582 = vmatprep.subr.mxu0 0.0
    %583 = vmatpush1.msra.mxu0 0.0
    %584 = vmatprep.subr.mxu0 0.0
    %585 = vmatpush1.msra.mxu0 0.0
    %586 = vmatprep.subr.mxu0 0.0
    %587 = vmatpush1.msra.mxu0 0.0
    %588 = vmatprep.subr.mxu0 0.0
    %589 = vmatpush1.msra.mxu0 0.0
    %590 = vmatprep.subr.mxu0 0.0
    %591 = vmatpush1.msra.mxu0 0.0
    %592 = vmatprep.subr.mxu0 0.0
    %593 = vmatpush1.msra.mxu0 0.0
    %594 = vmatprep.subr.mxu0 0.0
    %595 = vmatpush1.msra.mxu0 0.0
    %596 = vmatprep.subr.mxu0 0.0
    %597 = vmatpush1.msra.mxu0 0.0
    %598 = vmatprep.subr.mxu0 0.0
    %599 = vmatpush1.msra.mxu0 0.0
    %600 = vmatprep.subr.mxu0 0.0
    %601 = vmatpush1.msra.mxu0 0.0
    %602 = vmatprep.subr.mxu0 0.0
    %603 = vmatpush1.msra.mxu0 0.0
    %604 = vmatprep.subr.mxu0 0.0
    %605 = vmatpush1.msra.mxu0 0.0
    %606 = vmatprep.subr.mxu0 0.0
    %607 = vmatpush1.msra.mxu0 0.0
    %608 = vmatprep.subr.mxu0 0.0
    %609 = vmatpush1.msra.mxu0 0.0
    %610 = vmatprep.subr.mxu0 0.0
    %611 = vmatpush1.msra.mxu0 0.0
    %612 = vmatprep.subr.mxu0 0.0
    %613 = vmatpush1.msra.mxu0 0.0
    %614 = vmatprep.subr.mxu0 0.0
    %615 = vmatpush1.msra.mxu0 0.0
    %616 = vmatprep.subr.mxu0 0.0
    %617 = vmatpush1.msra.mxu0 0.0
    %618 = vmatprep.subr.mxu0 0.0
    %619 = vmatpush1.msra.mxu0 0.0
    %620 = vmatprep.subr.mxu0 0.0
    %621 = vmatpush1.msra.mxu0 0.0
    %622 = vmatprep.subr.mxu0 0.0
    %623 = vmatpush1.msra.mxu0 0.0
    %624 = vmatprep.subr.mxu0 0.0
    %625 = vmatpush1.msra.mxu0 0.0
    %626 = vmatprep.subr.mxu0 0.0
    %627 = vmatpush1.msra.mxu0 0.0
    %628 = vmatprep.subr.mxu0 0.0
    %629 = vmatpush1.msra.mxu0 0.0
    %630 = vmatprep.subr.mxu0 0.0
    %631 = vmatpush1.msra.mxu0 0.0
    %632 = vmatprep.subr.mxu0 0.0
    %633 = vmatpush1.msra.mxu0 0.0
    %634 = vmatprep.subr.mxu0 0.0
    %635 = vmatpush1.msra.mxu0 0.0
    %636 = vmatprep.mubr.f32.mxu0 0.0
    %637 = vmatmul.mubr.f32.gmra.mrb[0].mxu0 %v570
    %v638 = vpop.f32.mrb[0].mxu0
    %v639 = vadd.f32 0.0, %v638
    %v640 = vpop.f32.mrb[0].mxu0
    %641 = vdwg.mxu0
    %642 = vrot.lane.b32.xlu0 %v139, 112
    %v643 = vpop.permute.xlu0 %642
    %644 = vrot.lane.b32.xlu0 %v135, 80
    %v645 = vpop.permute.xlu0 %644
    %v646 = vsel %vm143, %v643, 0
    %v648 = vsel %vm143, %v645, 0
    %650 = vmatprep.subr.mxu0 0.0
    %651 = vmatpush1.xpose.msra.mxu0 %v648
    %652 = vmatprep.subr.mxu0 0.0
    %653 = vmatpush1.xpose.msra.mxu0 0.0
    %654 = vmatprep.subr.mxu0 0.0
    %655 = vmatpush1.xpose.msra.mxu0 0.0
    %656 = vmatprep.subr.mxu0 0.0
    %657 = vmatpush1.xpose.msra.mxu0 0.0
    %658 = vmatprep.subr.mxu0 0.0
    %659 = vmatpush1.xpose.msra.mxu0 0.0
    %660 = vmatprep.subr.mxu0 0.0
    %661 = vmatpush1.xpose.msra.mxu0 0.0
    %662 = vmatprep.subr.mxu0 0.0
    %663 = vmatpush1.xpose.msra.mxu0 0.0
    %664 = vmatprep.subr.mxu0 0.0
    %665 = vmatpush1.xpose.msra.mxu0 0.0
    %666 = vmatprep.subr.mxu0 0.0
    %667 = vmatpush1.xpose.msra.mxu0 0.0
    %668 = vmatprep.subr.mxu0 0.0
    %669 = vmatpush1.xpose.msra.mxu0 0.0
    %670 = vmatprep.subr.mxu0 0.0
    %671 = vmatpush1.xpose.msra.mxu0 0.0
    %672 = vmatprep.subr.mxu0 0.0
    %673 = vmatpush1.xpose.msra.mxu0 0.0
    %674 = vmatprep.subr.mxu0 0.0
    %675 = vmatpush1.xpose.msra.mxu0 0.0
    %676 = vmatprep.subr.mxu0 0.0
    %677 = vmatpush1.xpose.msra.mxu0 0.0
    %678 = vmatprep.subr.mxu0 0.0
    %679 = vmatpush1.xpose.msra.mxu0 0.0
    %680 = vmatprep.subr.mxu0 0.0
    %681 = vmatpush1.xpose.msra.mxu0 0.0
    %682 = vmatprep.subr.mxu0 0.0
    %683 = vmatpush1.xpose.msra.mxu0 0.0
    %684 = vmatprep.subr.mxu0 0.0
    %685 = vmatpush1.xpose.msra.mxu0 0.0
    %686 = vmatprep.subr.mxu0 0.0
    %687 = vmatpush1.xpose.msra.mxu0 0.0
    %688 = vmatprep.subr.mxu0 0.0
    %689 = vmatpush1.xpose.msra.mxu0 0.0
    %690 = vmatprep.subr.mxu0 0.0
    %691 = vmatpush1.xpose.msra.mxu0 0.0
    %692 = vmatprep.subr.mxu0 0.0
    %693 = vmatpush1.xpose.msra.mxu0 0.0
    %694 = vmatprep.subr.mxu0 0.0
    %695 = vmatpush1.xpose.msra.mxu0 0.0
    %696 = vmatprep.subr.mxu0 0.0
    %697 = vmatpush1.xpose.msra.mxu0 0.0
    %698 = vmatprep.subr.mxu0 0.0
    %699 = vmatpush1.xpose.msra.mxu0 0.0
    %700 = vmatprep.subr.mxu0 0.0
    %701 = vmatpush1.xpose.msra.mxu0 0.0
    %702 = vmatprep.subr.mxu0 0.0
    %703 = vmatpush1.xpose.msra.mxu0 0.0
    %704 = vmatprep.subr.mxu0 0.0
    %705 = vmatpush1.xpose.msra.mxu0 0.0
    %706 = vmatprep.subr.mxu0 0.0
    %707 = vmatpush1.xpose.msra.mxu0 0.0
    %708 = vmatprep.subr.mxu0 0.0
    %709 = vmatpush1.xpose.msra.mxu0 0.0
    %710 = vmatprep.subr.mxu0 0.0
    %711 = vmatpush1.xpose.msra.mxu0 0.0
    %712 = vmatprep.subr.mxu0 0.0
    %713 = vmatpush1.xpose.msra.mxu0 0.0
    %714 = vmatprep.mubr.f32.mxu0 0.0
    %715 = vmatmul.mubr.f32.gmra.mrb[0].mxu0 %v646
    %v716 = vpop.f32.mrb[0].mxu0
    %v717 = vadd.f32 0.0, %v716
    %v718 = vpop.f32.mrb[0].mxu0
    %719 = vdwg.mxu0
    %v720 = vsel %vm219, %v717, -inf
    %721 = vmax.xlane.f32.xlu0 %v720
    %v722 = vpop.xlane.xlu0 %721
    %v723 = vsub.f32 %v717, %v722
    %v724 = vmul.f32 %v723, 1.442695
    %v725 = vpow.pop %v724
    %v726 = vsel %vm219, %v725, 0.0
    %727 = vadd.xlane.f32.xlu0 %v726
    %v728 = vpop.xlane.xlu0 %727
    %v729 = vrcp.pop %v728
    %v730 = vmul.f32 %v725, %v729
    %731 = vrot.lane.b32.xlu0 %v135, 48
    %v732 = vpop.permute.xlu0 %731
    %v735 = vsel %vm219, %v730, 0
    %737 = vmatprep.subr.mxu0 0.0
    %738 = vmatpush1.msra.mxu0 %v732
    %739 = vmatprep.subr.mxu0 0.0
    %740 = vmatpush1.msra.mxu0 0.0
    %741 = vmatprep.subr.mxu0 0.0
    %742 = vmatpush1.msra.mxu0 0.0
    %743 = vmatprep.subr.mxu0 0.0
    %744 = vmatpush1.msra.mxu0 0.0
    %745 = vmatprep.subr.mxu0 0.0
    %746 = vmatpush1.msra.mxu0 0.0
    %747 = vmatprep.subr.mxu0 0.0
    %748 = vmatpush1.msra.mxu0 0.0
    %749 = vmatprep.subr.mxu0 0.0
    %750 = vmatpush1.msra.mxu0 0.0
    %751 = vmatprep.subr.mxu0 0.0
    %752 = vmatpush1.msra.mxu0 0.0
    %753 = vmatprep.subr.mxu0 0.0
    %754 = vmatpush1.msra.mxu0 0.0
    %755 = vmatprep.subr.mxu0 0.0
    %756 = vmatpush1.msra.mxu0 0.0
    %757 = vmatprep.subr.mxu0 0.0
    %758 = vmatpush1.msra.mxu0 0.0
    %759 = vmatprep.subr.mxu0 0.0
    %760 = vmatpush1.msra.mxu0 0.0
    %761 = vmatprep.subr.mxu0 0.0
    %762 = vmatpush1.msra.mxu0 0.0
    %763 = vmatprep.subr.mxu0 0.0
    %764 = vmatpush1.msra.mxu0 0.0
    %765 = vmatprep.subr.mxu0 0.0
    %766 = vmatpush1.msra.mxu0 0.0
    %767 = vmatprep.subr.mxu0 0.0
    %768 = vmatpush1.msra.mxu0 0.0
    %769 = vmatprep.subr.mxu0 0.0
    %770 = vmatpush1.msra.mxu0 0.0
    %771 = vmatprep.subr.mxu0 0.0
    %772 = vmatpush1.msra.mxu0 0.0
    %773 = vmatprep.subr.mxu0 0.0
    %774 = vmatpush1.msra.mxu0 0.0
    %775 = vmatprep.subr.mxu0 0.0
    %776 = vmatpush1.msra.mxu0 0.0
    %777 = vmatprep.subr.mxu0 0.0
    %778 = vmatpush1.msra.mxu0 0.0
    %779 = vmatprep.subr.mxu0 0.0
    %780 = vmatpush1.msra.mxu0 0.0
    %781 = vmatprep.subr.mxu0 0.0
    %782 = vmatpush1.msra.mxu0 0.0
    %783 = vmatprep.subr.mxu0 0.0
    %784 = vmatpush1.msra.mxu0 0.0
    %785 = vmatprep.subr.mxu0 0.0
    %786 = vmatpush1.msra.mxu0 0.0
    %787 = vmatprep.subr.mxu0 0.0
    %788 = vmatpush1.msra.mxu0 0.0
    %789 = vmatprep.subr.mxu0 0.0
    %790 = vmatpush1.msra.mxu0 0.0
    %791 = vmatprep.subr.mxu0 0.0
    %792 = vmatpush1.msra.mxu0 0.0
    %793 = vmatprep.subr.mxu0 0.0
    %794 = vmatpush1.msra.mxu0 0.0
    %795 = vmatprep.subr.mxu0 0.0
    %796 = vmatpush1.msra.mxu0 0.0
    %797 = vmatprep.subr.mxu0 0.0
    %798 = vmatpush1.msra.mxu0 0.0
    %799 = vmatprep.subr.mxu0 0.0
    %800 = vmatpush1.msra.mxu0 0.0
    %801 = vmatprep.mubr.f32.mxu0 0.0
    %802 = vmatmul.mubr.f32.gmra.mrb[0].mxu0 %v735
    %v803 = vpop.f32.mrb[0].mxu0
    %v804 = vadd.f32 0.0, %v803
    %v805 = vpop.f32.mrb[0].mxu0
    %806 = vdwg.mxu0
    %808 = vrot.lane.b32.xlu0 %v804, 16
    %v809 = vpop.permute.xlu0 %808
    %v811 = vsel %vm143, %v639, %v809
    %v812 = vcombine.high %v476, 0.0
    %v814 = vunpack.c.l.s4 1983009808
    %v815 = vunpack.c.0.s8 %v814
    %v816 = vlaneseq
    %v817 = vshrl.u32 %v816, 7
    %v818 = vsub.s32 %v815, %v817
    %v819 = vrot.slane %v476, %v818
    %v821 = vunpack.c.l.s4 1983009808
    %v822 = vunpack.c.0.s8 %v821
    %v823 = vlaneseq
    %v824 = vshrl.u32 %v823, 7
    %v825 = vsub.s32 %v822, %v824
    %v826 = vrot.slane %v812, %v825
    %v827 = vcombine.high %v811, 0.0
    %v829 = vunpack.c.l.s4 1983009808
    %v830 = vunpack.c.0.s8 %v829
    %v831 = vlaneseq
    %v832 = vshrl.u32 %v831, 7
    %v833 = vsub.s32 %v830, %v832
    %v834 = vrot.slane %v811, %v833
    %v836 = vunpack.c.l.s4 1983009808
    %v837 = vunpack.c.0.s8 %v836
    %v838 = vlaneseq
    %v839 = vshrl.u32 %v838, 7
    %v840 = vsub.s32 %v837, %v839
    %v841 = vrot.slane %v827, %v840
    %v842 = vcombine.low %v819, %v834
    %v843 = vcombine.high %v819, %v834
    %v845 = vunpack.c.l.s4 1934713408
    %v846 = vunpack.c.0.s8 %v845
    %v847 = vlaneseq
    %v848 = vshrl.u32 %v847, 7
    %v849 = vsub.s32 %v846, %v848
    %v850 = vrot.slane %v842, %v849
    %v852 = vunpack.c.l.s4 1934713408
    %v853 = vunpack.c.0.s8 %v852
    %v854 = vlaneseq
    %v855 = vshrl.u32 %v854, 7
    %v856 = vsub.s32 %v853, %v855
    %v857 = vrot.slane %v843, %v856
    %v858 = vcombine.low %v826, %v841
    %v859 = vcombine.high %v826, %v841
    %v861 = vunpack.c.l.s4 1934713408
    %v862 = vunpack.c.0.s8 %v861
    %v863 = vlaneseq
    %v864 = vshrl.u32 %v863, 7
    %v865 = vsub.s32 %v862, %v864
    %v866 = vrot.slane %v858, %v865
    %v868 = vunpack.c.l.s4 1934713408
    %v869 = vunpack.c.0.s8 %v868
    %v870 = vlaneseq
    %v871 = vshrl.u32 %v870, 7
    %v872 = vsub.s32 %v869, %v871
    %v873 = vrot.slane %v859, %v872
    %v874 = vcombine.high %v850, 0.0
    %v875 = vcombine.high %v857, 0.0
    %v876 = vcombine.high %v866, 0.0
    %v877 = vcombine.high %v873, 0.0
    %879 = vrot.lane.b32.xlu0 %v874, 32
    %v880 = vpop.permute.xlu0 %879
    %883 = vrot.lane.b32.xlu0 %v857, 64
    %v884 = vpop.permute.xlu0 %883
    %887 = vrot.lane.b32.xlu0 %v875, 96
    %v888 = vpop.permute.xlu0 %887
    %891 = vrot.lane.b32.xlu0 %v876, 32
    %v892 = vpop.permute.xlu0 %891
    %895 = vrot.lane.b32.xlu0 %v873, 64
    %v896 = vpop.permute.xlu0 %895
    %899 = vrot.lane.b32.xlu0 %v877, 96
    %v900 = vpop.permute.xlu0 %899
    %v902 = vsel %vm56, %v850, %v880
    %vm903 = vcmask 523264
    %v904 = vsel %vm903, %v902, %v884
    %vm905 = vcmask 785408
    %v906 = vsel %vm905, %v904, %v888
    %v907 = vsel %vm56, %v866, %v892
    %v908 = vsel %vm903, %v907, %v896
    %v909 = vsel %vm905, %v908, %v900
    %v912 = vcombine.low %v906, %v909
    %v914 = vunpack.c.l.s4 1983009808
    %v915 = vunpack.c.0.s8 %v914
    %v916 = vlaneseq
    %v917 = vshrl.u32 %v916, 7
    %v918 = vsub.s32 %v915, %v917
    %v919 = vrot.slane %v912, %v918
    %921 = vst [vmem:[#allocation7] sm:$0xf] %v919
    // Predicated region
    $region22: #{tpu_custom_call.1} parent=1 // pred_check
      _
    $region23: #{tpu_custom_call.1} parent=1 // pred_check_branch
      %923 = sbr.rel (0) target = $region25
    $region24: #{tpu_custom_call.1} parent=1 // pred_region
      %s925 = ssub.s32 64, 64
      %926 = vsyncadd [#allocation4], %s925
      %s928 = sshll.u32 [#allocation7], 4
      %s929 = int_to_ptr.vmem [resolvable:$true] %s928
      %931 = dma.vmem_to_hbm [thread:$0]  %s929, 64, %s3, [#allocation4]
    $region25: #{tpu_custom_call.1} parent=1 // pred_fallthru
      _
    // Predicated region
    $region26: #{tpu_custom_call.1} parent=1 // pred_check
      _
    $region27: #{tpu_custom_call.1} parent=1 // pred_check_branch
      %933 = sbr.rel (0) target = $region29
    $region28: #{tpu_custom_call.1} parent=1 // pred_region
      %934 = dma.done [#allocation4], 64
    $region29: #{tpu_custom_call.1} parent=1 // pred_fallthru
      _
    %935 = vsyncpa [#allocation3], 1
    %936 = vsyncpa [#allocation6], 1
    %937 = vsyncpa [#allocation4], 1

// kernel: tpu_custom_call.1
$region0: #{tpu_custom_call.1}
  #allocation0 [shape = 'u32[]', space=smem, size = 0x4, offset = 0x4, fixed_abs, tag = 'smem constant byte address 0x4 - core index']
  #allocation1 [shape = 'u32[144,128]{1,0:T(1,128)}', space=vmem, size = 0x12000, scoped, tag = 'internal scratch']
  %s0 = inlined_call_operand.hbm [shape: f32[2,8,32], index: 0, kind: input, shape index: {}]
  %s1 = inlined_call_operand.hbm [shape: f32[32,96], index: 1, kind: input, shape index: {}]
  %s2 = inlined_call_operand.vmem [shape: f32[1,96], index: 2, kind: input, shape index: {}]
  %s3 = inlined_call_operand.hbm [shape: f32[2,8,32], index: 3, kind: output, shape index: {}]
  %s4 = sld [smem:[#allocation0]]
  $region30: #{tpu_custom_call.1} parent=0
    _
  %s6 = ssub.s32 1, %s4
  %s7 = scalar_select 0, %s6, %s4
  $region1: #{tpu_custom_call.1} parent=0
    #allocation2 [shape = 'u8[8192]{0}', space=vmem, size = 0x2000, scoped, tag = 'input window, operand 0, single buffered']
    #allocation3 [shape = 's32[1]{0}', space=sflag, size = 0x4, scoped, tag = 'scoped memory for tpu_custom_call.1']
    #allocation4 [shape = 's32[1]{0}', space=sflag, size = 0x4, scoped, tag = 'scoped memory for tpu_custom_call.1']
    #allocation5 [shape = 'u8[16384]{0}', space=vmem, size = 0x4000, scoped, tag = 'input window, operand 1, single buffered']
    #allocation6 [shape = 's32[1]{0}', space=sflag, size = 0x4, scoped, tag = 'scoped memory for tpu_custom_call.1']
    #allocation7 [shape = 'u8[8192]{0}', space=vmem, size = 0x2000, scoped, tag = 'output window, operand 0, single buffered']
    %8 = vsyncpa [#allocation3], 0
    %9 = vsyncpa [#allocation6], 0
    %10 = vsyncpa [#allocation4], 0
    // Predicated region
    $region2: #{tpu_custom_call.1} parent=1 // pred_check
      _
    $region3: #{tpu_custom_call.1} parent=1 // pred_check_branch
      %12 = sbr.rel (0) target = $region5
    $region4: #{tpu_custom_call.1} parent=1 // pred_region
      %s14 = ssub.s32 256, 256
      %15 = vsyncadd [#allocation3], %s14
      %s16 = sshll.u32 [#allocation2], 4
      %s17 = int_to_ptr.vmem [resolvable:$true] %s16
      %22 = dma.hbm_to_vmem [thread:$0]  %s0, 256, %s17, [#allocation3], 128, 128, 8
    $region5: #{tpu_custom_call.1} parent=1 // pred_fallthru
      _
    // Predicated region
    $region6: #{tpu_custom_call.1} parent=1 // pred_check
      _
    $region7: #{tpu_custom_call.1} parent=1 // pred_check_branch
      %24 = sbr.rel (0) target = $region9
    $region8: #{tpu_custom_call.1} parent=1 // pred_region
      %s26 = ssub.s32 512, 512
      %27 = vsyncadd [#allocation6], %s26
      %s28 = sshll.u32 [#allocation5], 4
      %s29 = int_to_ptr.vmem [resolvable:$true] %s28
      %34 = dma.hbm_to_vmem [thread:$0]  %s1, 512, %s29, [#allocation6], 128, 128, 8
    $region9: #{tpu_custom_call.1} parent=1 // pred_fallthru
      _
    // Predicated region
    $region10: #{tpu_custom_call.1} parent=1 // pred_check
      _
    $region11: #{tpu_custom_call.1} parent=1 // pred_check_branch
      %36 = sbr.rel (0) target = $region13
    $region12: #{tpu_custom_call.1} parent=1 // pred_region
      _
    $region13: #{tpu_custom_call.1} parent=1 // pred_fallthru
      _
    // Predicated region
    $region14: #{tpu_custom_call.1} parent=1 // pred_check
      _
    $region15: #{tpu_custom_call.1} parent=1 // pred_check_branch
      %38 = sbr.rel (0) target = $region17
    $region16: #{tpu_custom_call.1} parent=1 // pred_region
      %39 = dma.done [#allocation3], 256
    $region17: #{tpu_custom_call.1} parent=1 // pred_fallthru
      _
    // Predicated region
    $region18: #{tpu_custom_call.1} parent=1 // pred_check
      _
    $region19: #{tpu_custom_call.1} parent=1 // pred_check_branch
      %41 = sbr.rel (0) target = $region21
    $region20: #{tpu_custom_call.1} parent=1 // pred_region
      %42 = dma.done [#allocation6], 512
    $region21: #{tpu_custom_call.1} parent=1 // pred_fallthru
      _
    %v43 = vld [vmem:[#allocation2] sm:$0xff]
    %v44 = vld [vmem:[#allocation2 + $0x8] sm:$0xff]
    %v45 = vld [vmem:[#allocation5] sm:$0xff]
    %v46 = vld [vmem:[#allocation5 + $0x8] sm:$0xff]
    %v47 = vld [vmem:[#allocation5 + $0x10] sm:$0xff]
    %v48 = vld [vmem:[#allocation5 + $0x18] sm:$0xff]
    %v49 = vld [vmem:[%s2] sm:$0x1]
    %v51 = vlaneseq
    %v52 = vshrl.u32 %v51, 7
    %v53 = vsub.s32 0, %v52
    %v54 = vrot.slane %v49, %v53
    %vm56 = vcmask 261120
    %v58 = vsel %vm56, %v43, 0
    %v61 = vsel %vm56, %v44, 0
    %63 = vmatprep.subr.mxu0 0.0
    %64 = vmatpush1.msra.mxu0 %v45
    %65 = vmatprep.subr.mxu0 0.0
    %66 = vmatpush1.msra.mxu0 %v46
    %67 = vmatprep.subr.mxu0 0.0
    %68 = vmatpush1.msra.mxu0 %v47
    %69 = vmatprep.subr.mxu0 0.0
    %70 = vmatpush1.msra.mxu0 %v48
    %71 = vmatprep.subr.mxu0 0.0
    %72 = vmatpush1.msra.mxu0 0.0
    %73 = vmatprep.subr.mxu0 0.0
    %74 = vmatpush1.msra.mxu0 0.0
    %75 = vmatprep.subr.mxu0 0.0
    %76 = vmatpush1.msra.mxu0 0.0
    %77 = vmatprep.subr.mxu0 0.0
    %78 = vmatpush1.msra.mxu0 0.0
    %79 = vmatprep.subr.mxu0 0.0
    %80 = vmatpush1.msra.mxu0 0.0
    %81 = vmatprep.subr.mxu0 0.0
    %82 = vmatpush1.msra.mxu0 0.0
    %83 = vmatprep.subr.mxu0 0.0
    %84 = vmatpush1.msra.mxu0 0.0
    %85 = vmatprep.subr.mxu0 0.0
    %86 = vmatpush1.msra.mxu0 0.0
    %87 = vmatprep.subr.mxu0 0.0
    %88 = vmatpush1.msra.mxu0 0.0
    %89 = vmatprep.subr.mxu0 0.0
    %90 = vmatpush1.msra.mxu0 0.0
    %91 = vmatprep.subr.mxu0 0.0
    %92 = vmatpush1.msra.mxu0 0.0
    %93 = vmatprep.subr.mxu0 0.0
    %94 = vmatpush1.msra.mxu0 0.0
    %95 = vmatprep.subr.mxu0 0.0
    %96 = vmatpush1.msra.mxu0 0.0
    %97 = vmatprep.subr.mxu0 0.0
    %98 = vmatpush1.msra.mxu0 0.0
    %99 = vmatprep.subr.mxu0 0.0
    %100 = vmatpush1.msra.mxu0 0.0
    %101 = vmatprep.subr.mxu0 0.0
    %102 = vmatpush1.msra.mxu0 0.0
    %103 = vmatprep.subr.mxu0 0.0
    %104 = vmatpush1.msra.mxu0 0.0
    %105 = vmatprep.subr.mxu0 0.0
    %106 = vmatpush1.msra.mxu0 0.0
    %107 = vmatprep.subr.mxu0 0.0
    %108 = vmatpush1.msra.mxu0 0.0
    %109 = vmatprep.subr.mxu0 0.0
    %110 = vmatpush1.msra.mxu0 0.0
    %111 = vmatprep.subr.mxu0 0.0
    %112 = vmatpush1.msra.mxu0 0.0
    %113 = vmatprep.subr.mxu0 0.0
    %114 = vmatpush1.msra.mxu0 0.0
    %115 = vmatprep.subr.mxu0 0.0
    %116 = vmatpush1.msra.mxu0 0.0
    %117 = vmatprep.subr.mxu0 0.0
    %118 = vmatpush1.msra.mxu0 0.0
    %119 = vmatprep.subr.mxu0 0.0
    %120 = vmatpush1.msra.mxu0 0.0
    %121 = vmatprep.subr.mxu0 0.0
    %122 = vmatpush1.msra.mxu0 0.0
    %123 = vmatprep.subr.mxu0 0.0
    %124 = vmatpush1.msra.mxu0 0.0
    %125 = vmatprep.subr.mxu0 0.0
    %126 = vmatpush1.msra.mxu0 0.0
    %127 = vmatprep.mubr.f32.mxu0 0.0
    %128 = vmatmul.mubr.f32.gmra.mrb[0].mxu0 %v58
    %v129 = vpop.f32.mrb[0].mxu0
    %v130 = vadd.f32 %v54, %v129
    %v131 = vpop.f32.mrb[0].mxu0
    %132 = vmatprep.mubr.f32.mxu0 0.0
    %133 = vmatmul.mubr.f32.gmra.mrb[0].mxu0 %v61
    %v134 = vpop.f32.mrb[0].mxu0
    %v135 = vadd.f32 %v54, %v134
    %v136 = vpop.f32.mrb[0].mxu0
    %137 = vdwg.mxu0
    %v138 = vmul.f32 %v130, 0.25
    %v139 = vmul.f32 %v135, 0.25
    %141 = vrot.lane.b32.xlu0 %v130, 96
    %v142 = vpop.permute.xlu0 %141
    %vm143 = vcmask 130048
    %v145 = vsel %vm143, %v138, 0
    %v147 = vsel %vm143, %v142, 0
    %149 = vmatprep.subr.mxu0 0.0
    %150 = vmatpush1.xpose.msra.mxu0 %v147
    %151 = vmatprep.subr.mxu0 0.0
    %152 = vmatpush1.xpose.msra.mxu0 0.0
    %153 = vmatprep.subr.mxu0 0.0
    %154 = vmatpush1.xpose.msra.mxu0 0.0
    %155 = vmatprep.subr.mxu0 0.0
    %156 = vmatpush1.xpose.msra.mxu0 0.0
    %157 = vmatprep.subr.mxu0 0.0
    %158 = vmatpush1.xpose.msra.mxu0 0.0
    %159 = vmatprep.subr.mxu0 0.0
    %160 = vmatpush1.xpose.msra.mxu0 0.0
    %161 = vmatprep.subr.mxu0 0.0
    %162 = vmatpush1.xpose.msra.mxu0 0.0
    %163 = vmatprep.subr.mxu0 0.0
    %164 = vmatpush1.xpose.msra.mxu0 0.0
    %165 = vmatprep.subr.mxu0 0.0
    %166 = vmatpush1.xpose.msra.mxu0 0.0
    %167 = vmatprep.subr.mxu0 0.0
    %168 = vmatpush1.xpose.msra.mxu0 0.0
    %169 = vmatprep.subr.mxu0 0.0
    %170 = vmatpush1.xpose.msra.mxu0 0.0
    %171 = vmatprep.subr.mxu0 0.0
    %172 = vmatpush1.xpose.msra.mxu0 0.0
    %173 = vmatprep.subr.mxu0 0.0
    %174 = vmatpush1.xpose.msra.mxu0 0.0
    %175 = vmatprep.subr.mxu0 0.0
    %176 = vmatpush1.xpose.msra.mxu0 0.0
    %177 = vmatprep.subr.mxu0 0.0
    %178 = vmatpush1.xpose.msra.mxu0 0.0
    %179 = vmatprep.subr.mxu0 0.0
    %180 = vmatpush1.xpose.msra.mxu0 0.0
    %181 = vmatprep.subr.mxu0 0.0
    %182 = vmatpush1.xpose.msra.mxu0 0.0
    %183 = vmatprep.subr.mxu0 0.0
    %184 = vmatpush1.xpose.msra.mxu0 0.0
    %185 = vmatprep.subr.mxu0 0.0
    %186 = vmatpush1.xpose.msra.mxu0 0.0
    %187 = vmatprep.subr.mxu0 0.0
    %188 = vmatpush1.xpose.msra.mxu0 0.0
    %189 = vmatprep.subr.mxu0 0.0
    %190 = vmatpush1.xpose.msra.mxu0 0.0
    %191 = vmatprep.subr.mxu0 0.0
    %192 = vmatpush1.xpose.msra.mxu0 0.0
    %193 = vmatprep.subr.mxu0 0.0
    %194 = vmatpush1.xpose.msra.mxu0 0.0
    %195 = vmatprep.subr.mxu0 0.0
    %196 = vmatpush1.xpose.msra.mxu0 0.0
    %197 = vmatprep.subr.mxu0 0.0
    %198 = vmatpush1.xpose.msra.mxu0 0.0
    %199 = vmatprep.subr.mxu0 0.0
    %200 = vmatpush1.xpose.msra.mxu0 0.0
    %201 = vmatprep.subr.mxu0 0.0
    %202 = vmatpush1.xpose.msra.mxu0 0.0
    %203 = vmatprep.subr.mxu0 0.0
    %204 = vmatpush1.xpose.msra.mxu0 0.0
    %205 = vmatprep.subr.mxu0 0.0
    %206 = vmatpush1.xpose.msra.mxu0 0.0
    %207 = vmatprep.subr.mxu0 0.0
    %208 = vmatpush1.xpose.msra.mxu0 0.0
    %209 = vmatprep.subr.mxu0 0.0
    %210 = vmatpush1.xpose.msra.mxu0 0.0
    %211 = vmatprep.subr.mxu0 0.0
    %212 = vmatpush1.xpose.msra.mxu0 0.0
    %213 = vmatprep.mubr.f32.mxu0 0.0
    %214 = vmatmul.mubr.f32.gmra.mrb[0].mxu0 %v145
    %v215 = vpop.f32.mrb[0].mxu0
    %v216 = vadd.f32 0.0, %v215
    %v217 = vpop.f32.mrb[0].mxu0
    %218 = vdwg.mxu0
    %vm219 = vcmask 64512
    %v220 = vsel %vm219, %v216, -inf
    %221 = vmax.xlane.f32.xlu0 %v220
    %v222 = vpop.xlane.xlu0 %221
    %v223 = vsub.f32 %v216, %v222
    %v224 = vmul.f32 %v223, 1.442695
    %v225 = vpow.pop %v224
    %v226 = vsel %vm219, %v225, 0.0
    %227 = vadd.xlane.f32.xlu0 %v226
    %v228 = vpop.xlane.xlu0 %227
    %v229 = vrcp.pop %v228
    %v230 = vmul.f32 %v225, %v229
    %231 = vrot.lane.b32.xlu0 %v130, 64
    %v232 = vpop.permute.xlu0 %231
    %v235 = vsel %vm219, %v230, 0
    %237 = vmatprep.subr.mxu0 0.0
    %238 = vmatpush1.msra.mxu0 %v232
    %239 = vmatprep.subr.mxu0 0.0
    %240 = vmatpush1.msra.mxu0 0.0
    %241 = vmatprep.subr.mxu0 0.0
    %242 = vmatpush1.msra.mxu0 0.0
    %243 = vmatprep.subr.mxu0 0.0
    %244 = vmatpush1.msra.mxu0 0.0
    %245 = vmatprep.subr.mxu0 0.0
    %246 = vmatpush1.msra.mxu0 0.0
    %247 = vmatprep.subr.mxu0 0.0
    %248 = vmatpush1.msra.mxu0 0.0
    %249 = vmatprep.subr.mxu0 0.0
    %250 = vmatpush1.msra.mxu0 0.0
    %251 = vmatprep.subr.mxu0 0.0
    %252 = vmatpush1.msra.mxu0 0.0
    %253 = vmatprep.subr.mxu0 0.0
    %254 = vmatpush1.msra.mxu0 0.0
    %255 = vmatprep.subr.mxu0 0.0
    %256 = vmatpush1.msra.mxu0 0.0
    %257 = vmatprep.subr.mxu0 0.0
    %258 = vmatpush1.msra.mxu0 0.0
    %259 = vmatprep.subr.mxu0 0.0
    %260 = vmatpush1.msra.mxu0 0.0
    %261 = vmatprep.subr.mxu0 0.0
    %262 = vmatpush1.msra.mxu0 0.0
    %263 = vmatprep.subr.mxu0 0.0
    %264 = vmatpush1.msra.mxu0 0.0
    %265 = vmatprep.subr.mxu0 0.0
    %266 = vmatpush1.msra.mxu0 0.0
    %267 = vmatprep.subr.mxu0 0.0
    %268 = vmatpush1.msra.mxu0 0.0
    %269 = vmatprep.subr.mxu0 0.0
    %270 = vmatpush1.msra.mxu0 0.0
    %271 = vmatprep.subr.mxu0 0.0
    %272 = vmatpush1.msra.mxu0 0.0
    %273 = vmatprep.subr.mxu0 0.0
    %274 = vmatpush1.msra.mxu0 0.0
    %275 = vmatprep.subr.mxu0 0.0
    %276 = vmatpush1.msra.mxu0 0.0
    %277 = vmatprep.subr.mxu0 0.0
    %278 = vmatpush1.msra.mxu0 0.0
    %279 = vmatprep.subr.mxu0 0.0
    %280 = vmatpush1.msra.mxu0 0.0
    %281 = vmatprep.subr.mxu0 0.0
    %282 = vmatpush1.msra.mxu0 0.0
    %283 = vmatprep.subr.mxu0 0.0
    %284 = vmatpush1.msra.mxu0 0.0
    %285 = vmatprep.subr.mxu0 0.0
    %286 = vmatpush1.msra.mxu0 0.0
    %287 = vmatprep.subr.mxu0 0.0
    %288 = vmatpush1.msra.mxu0 0.0
    %289 = vmatprep.subr.mxu0 0.0
    %290 = vmatpush1.msra.mxu0 0.0
    %291 = vmatprep.subr.mxu0 0.0
    %292 = vmatpush1.msra.mxu0 0.0
    %293 = vmatprep.subr.mxu0 0.0
    %294 = vmatpush1.msra.mxu0 0.0
    %295 = vmatprep.subr.mxu0 0.0
    %296 = vmatpush1.msra.mxu0 0.0
    %297 = vmatprep.subr.mxu0 0.0
    %298 = vmatpush1.msra.mxu0 0.0
    %299 = vmatprep.subr.mxu0 0.0
    %300 = vmatpush1.msra.mxu0 0.0
    %301 = vmatprep.mubr.f32.mxu0 0.0
    %302 = vmatmul.mubr.f32.gmra.mrb[0].mxu0 %v235
    %v303 = vpop.f32.mrb[0].mxu0
    %v304 = vadd.f32 0.0, %v303
    %v305 = vpop.f32.mrb[0].mxu0
    %306 = vdwg.mxu0
    %307 = vrot.lane.b32.xlu0 %v138, 112
    %v308 = vpop.permute.xlu0 %307
    %309 = vrot.lane.b32.xlu0 %v130, 80
    %v310 = vpop.permute.xlu0 %309
    %v311 = vsel %vm143, %v308, 0
    %v313 = vsel %vm143, %v310, 0
    %315 = vmatprep.subr.mxu0 0.0
    %316 = vmatpush1.xpose.msra.mxu0 %v313
    %317 = vmatprep.subr.mxu0 0.0
    %318 = vmatpush1.xpose.msra.mxu0 0.0
    %319 = vmatprep.subr.mxu0 0.0
    %320 = vmatpush1.xpose.msra.mxu0 0.0
    %321 = vmatprep.subr.mxu0 0.0
    %322 = vmatpush1.xpose.msra.mxu0 0.0
    %323 = vmatprep.subr.mxu0 0.0
    %324 = vmatpush1.xpose.msra.mxu0 0.0
    %325 = vmatprep.subr.mxu0 0.0
    %326 = vmatpush1.xpose.msra.mxu0 0.0
    %327 = vmatprep.subr.mxu0 0.0
    %328 = vmatpush1.xpose.msra.mxu0 0.0
    %329 = vmatprep.subr.mxu0 0.0
    %330 = vmatpush1.xpose.msra.mxu0 0.0
    %331 = vmatprep.subr.mxu0 0.0
    %332 = vmatpush1.xpose.msra.mxu0 0.0
    %333 = vmatprep.subr.mxu0 0.0
    %334 = vmatpush1.xpose.msra.mxu0 0.0
    %335 = vmatprep.subr.mxu0 0.0
    %336 = vmatpush1.xpose.msra.mxu0 0.0
    %337 = vmatprep.subr.mxu0 0.0
    %338 = vmatpush1.xpose.msra.mxu0 0.0
    %339 = vmatprep.subr.mxu0 0.0
    %340 = vmatpush1.xpose.msra.mxu0 0.0
    %341 = vmatprep.subr.mxu0 0.0
    %342 = vmatpush1.xpose.msra.mxu0 0.0
    %343 = vmatprep.subr.mxu0 0.0
    %344 = vmatpush1.xpose.msra.mxu0 0.0
    %345 = vmatprep.subr.mxu0 0.0
    %346 = vmatpush1.xpose.msra.mxu0 0.0
    %347 = vmatprep.subr.mxu0 0.0
    %348 = vmatpush1.xpose.msra.mxu0 0.0
    %349 = vmatprep.subr.mxu0 0.0
    %350 = vmatpush1.xpose.msra.mxu0 0.0
    %351 = vmatprep.subr.mxu0 0.0
    %352 = vmatpush1.xpose.msra.mxu0 0.0
    %353 = vmatprep.subr.mxu0 0.0
    %354 = vmatpush1.xpose.msra.mxu0 0.0
    %355 = vmatprep.subr.mxu0 0.0
    %356 = vmatpush1.xpose.msra.mxu0 0.0
    %357 = vmatprep.subr.mxu0 0.0
    %358 = vmatpush1.xpose.msra.mxu0 0.0
    %359 = vmatprep.subr.mxu0 0.0
    %360 = vmatpush1.xpose.msra.mxu0 0.0
    %361 = vmatprep.subr.mxu0 0.0
    %362 = vmatpush1.xpose.msra.mxu0 0.0
    %363 = vmatprep.subr.mxu0 0.0
    %364 = vmatpush1.xpose.msra.mxu0 0.0
    %365 = vmatprep.subr.mxu0 0.0
    %366 = vmatpush1.xpose.msra.mxu0 0.0
    %367 = vmatprep.subr.mxu0 0.0
    %368 = vmatpush1.xpose.msra.mxu0 0.0
    %369 = vmatprep.subr.mxu0 0.0
    %370 = vmatpush1.xpose.msra.mxu0 0.0
    %371 = vmatprep.subr.mxu0 0.0
    %372 = vmatpush1.xpose.msra.mxu0 0.0
    %373 = vmatprep.subr.mxu0 0.0
    %374 = vmatpush1.xpose.msra.mxu0 0.0
    %375 = vmatprep.subr.mxu0 0.0
    %376 = vmatpush1.xpose.msra.mxu0 0.0
    %377 = vmatprep.subr.mxu0 0.0
    %378 = vmatpush1.xpose.msra.mxu0 0.0
    %379 = vmatprep.mubr.f32.mxu0 0.0
    %380 = vmatmul.mubr.f32.gmra.mrb[0].mxu0 %v311
    %v381 = vpop.f32.mrb[0].mxu0
    %v382 = vadd.f32 0.0, %v381
    %v383 = vpop.f32.mrb[0].mxu0
    %384 = vdwg.mxu0
    %v385 = vsel %vm219, %v382, -inf
    %386 = vmax.xlane.f32.xlu0 %v385
    %v387 = vpop.xlane.xlu0 %386
    %v388 = vsub.f32 %v382, %v387
    %v389 = vmul.f32 %v388, 1.442695
    %v390 = vpow.pop %v389
    %v391 = vsel %vm219, %v390, 0.0
    %392 = vadd.xlane.f32.xlu0 %v391
    %v393 = vpop.xlane.xlu0 %392
    %v394 = vrcp.pop %v393
    %v395 = vmul.f32 %v390, %v394
    %396 = vrot.lane.b32.xlu0 %v130, 48
    %v397 = vpop.permute.xlu0 %396
    %v400 = vsel %vm219, %v395, 0
    %402 = vmatprep.subr.mxu0 0.0
    %403 = vmatpush1.msra.mxu0 %v397
    %404 = vmatprep.subr.mxu0 0.0
    %405 = vmatpush1.msra.mxu0 0.0
    %406 = vmatprep.subr.mxu0 0.0
    %407 = vmatpush1.msra.mxu0 0.0
    %408 = vmatprep.subr.mxu0 0.0
    %409 = vmatpush1.msra.mxu0 0.0
    %410 = vmatprep.subr.mxu0 0.0
    %411 = vmatpush1.msra.mxu0 0.0
    %412 = vmatprep.subr.mxu0 0.0
    %413 = vmatpush1.msra.mxu0 0.0
    %414 = vmatprep.subr.mxu0 0.0
    %415 = vmatpush1.msra.mxu0 0.0
    %416 = vmatprep.subr.mxu0 0.0
    %417 = vmatpush1.msra.mxu0 0.0
    %418 = vmatprep.subr.mxu0 0.0
    %419 = vmatpush1.msra.mxu0 0.0
    %420 = vmatprep.subr.mxu0 0.0
    %421 = vmatpush1.msra.mxu0 0.0
    %422 = vmatprep.subr.mxu0 0.0
    %423 = vmatpush1.msra.mxu0 0.0
    %424 = vmatprep.subr.mxu0 0.0
    %425 = vmatpush1.msra.mxu0 0.0
    %426 = vmatprep.subr.mxu0 0.0
    %427 = vmatpush1.msra.mxu0 0.0
    %428 = vmatprep.subr.mxu0 0.0
    %429 = vmatpush1.msra.mxu0 0.0
    %430 = vmatprep.subr.mxu0 0.0
    %431 = vmatpush1.msra.mxu0 0.0
    %432 = vmatprep.subr.mxu0 0.0
    %433 = vmatpush1.msra.mxu0 0.0
    %434 = vmatprep.subr.mxu0 0.0
    %435 = vmatpush1.msra.mxu0 0.0
    %436 = vmatprep.subr.mxu0 0.0
    %437 = vmatpush1.msra.mxu0 0.0
    %438 = vmatprep.subr.mxu0 0.0
    %439 = vmatpush1.msra.mxu0 0.0
    %440 = vmatprep.subr.mxu0 0.0
    %441 = vmatpush1.msra.mxu0 0.0
    %442 = vmatprep.subr.mxu0 0.0
    %443 = vmatpush1.msra.mxu0 0.0
    %444 = vmatprep.subr.mxu0 0.0
    %445 = vmatpush1.msra.mxu0 0.0
    %446 = vmatprep.subr.mxu0 0.0
    %447 = vmatpush1.msra.mxu0 0.0
    %448 = vmatprep.subr.mxu0 0.0
    %449 = vmatpush1.msra.mxu0 0.0
    %450 = vmatprep.subr.mxu0 0.0
    %451 = vmatpush1.msra.mxu0 0.0
    %452 = vmatprep.subr.mxu0 0.0
    %453 = vmatpush1.msra.mxu0 0.0
    %454 = vmatprep.subr.mxu0 0.0
    %455 = vmatpush1.msra.mxu0 0.0
    %456 = vmatprep.subr.mxu0 0.0
    %457 = vmatpush1.msra.mxu0 0.0
    %458 = vmatprep.subr.mxu0 0.0
    %459 = vmatpush1.msra.mxu0 0.0
    %460 = vmatprep.subr.mxu0 0.0
    %461 = vmatpush1.msra.mxu0 0.0
    %462 = vmatprep.subr.mxu0 0.0
    %463 = vmatpush1.msra.mxu0 0.0
    %464 = vmatprep.subr.mxu0 0.0
    %465 = vmatpush1.msra.mxu0 0.0
    %466 = vmatprep.mubr.f32.mxu0 0.0
    %467 = vmatmul.mubr.f32.gmra.mrb[0].mxu0 %v400
    %v468 = vpop.f32.mrb[0].mxu0
    %v469 = vadd.f32 0.0, %v468
    %v470 = vpop.f32.mrb[0].mxu0
    %471 = vdwg.mxu0
    %473 = vrot.lane.b32.xlu0 %v469, 16
    %v474 = vpop.permute.xlu0 %473
    %v476 = vsel %vm143, %v304, %v474
    %478 = vrot.lane.b32.xlu0 %v135, 96
    %v479 = vpop.permute.xlu0 %478
    %v481 = vsel %vm143, %v139, 0
    %v483 = vsel %vm143, %v479, 0
    %485 = vmatprep.subr.mxu0 0.0
    %486 = vmatpush1.xpose.msra.mxu0 %v483
    %487 = vmatprep.subr.mxu0 0.0
    %488 = vmatpush1.xpose.msra.mxu0 0.0
    %489 = vmatprep.subr.mxu0 0.0
    %490 = vmatpush1.xpose.msra.mxu0 0.0
    %491 = vmatprep.subr.mxu0 0.0
    %492 = vmatpush1.xpose.msra.mxu0 0.0
    %493 = vmatprep.subr.mxu0 0.0
    %494 = vmatpush1.xpose.msra.mxu0 0.0
    %495 = vmatprep.subr.mxu0 0.0
    %496 = vmatpush1.xpose.msra.mxu0 0.0
    %497 = vmatprep.subr.mxu0 0.0
    %498 = vmatpush1.xpose.msra.mxu0 0.0
    %499 = vmatprep.subr.mxu0 0.0
    %500 = vmatpush1.xpose.msra.mxu0 0.0
    %501 = vmatprep.subr.mxu0 0.0
    %502 = vmatpush1.xpose.msra.mxu0 0.0
    %503 = vmatprep.subr.mxu0 0.0
    %504 = vmatpush1.xpose.msra.mxu0 0.0
    %505 = vmatprep.subr.mxu0 0.0
    %506 = vmatpush1.xpose.msra.mxu0 0.0
    %507 = vmatprep.subr.mxu0 0.0
    %508 = vmatpush1.xpose.msra.mxu0 0.0
    %509 = vmatprep.subr.mxu0 0.0
    %510 = vmatpush1.xpose.msra.mxu0 0.0
    %511 = vmatprep.subr.mxu0 0.0
    %512 = vmatpush1.xpose.msra.mxu0 0.0
    %513 = vmatprep.subr.mxu0 0.0
    %514 = vmatpush1.xpose.msra.mxu0 0.0
    %515 = vmatprep.subr.mxu0 0.0
    %516 = vmatpush1.xpose.msra.mxu0 0.0
    %517 = vmatprep.subr.mxu0 0.0
    %518 = vmatpush1.xpose.msra.mxu0 0.0
    %519 = vmatprep.subr.mxu0 0.0
    %520 = vmatpush1.xpose.msra.mxu0 0.0
    %521 = vmatprep.subr.mxu0 0.0
    %522 = vmatpush1.xpose.msra.mxu0 0.0
    %523 = vmatprep.subr.mxu0 0.0
    %524 = vmatpush1.xpose.msra.mxu0 0.0
    %525 = vmatprep.subr.mxu0 0.0
    %526 = vmatpush1.xpose.msra.mxu0 0.0
    %527 = vmatprep.subr.mxu0 0.0
    %528 = vmatpush1.xpose.msra.mxu0 0.0
    %529 = vmatprep.subr.mxu0 0.0
    %530 = vmatpush1.xpose.msra.mxu0 0.0
    %531 = vmatprep.subr.mxu0 0.0
    %532 = vmatpush1.xpose.msra.mxu0 0.0
    %533 = vmatprep.subr.mxu0 0.0
    %534 = vmatpush1.xpose.msra.mxu0 0.0
    %535 = vmatprep.subr.mxu0 0.0
    %536 = vmatpush1.xpose.msra.mxu0 0.0
    %537 = vmatprep.subr.mxu0 0.0
    %538 = vmatpush1.xpose.msra.mxu0 0.0
    %539 = vmatprep.subr.mxu0 0.0
    %540 = vmatpush1.xpose.msra.mxu0 0.0
    %541 = vmatprep.subr.mxu0 0.0
    %542 = vmatpush1.xpose.msra.mxu0 0.0
    %543 = vmatprep.subr.mxu0 0.0
    %544 = vmatpush1.xpose.msra.mxu0 0.0
    %545 = vmatprep.subr.mxu0 0.0
    %546 = vmatpush1.xpose.msra.mxu0 0.0
    %547 = vmatprep.subr.mxu0 0.0
    %548 = vmatpush1.xpose.msra.mxu0 0.0
    %549 = vmatprep.mubr.f32.mxu0 0.0
    %550 = vmatmul.mubr.f32.gmra.mrb[0].mxu0 %v481
    %v551 = vpop.f32.mrb[0].mxu0
    %v552 = vadd.f32 0.0, %v551
    %v553 = vpop.f32.mrb[0].mxu0
    %554 = vdwg.mxu0
    %v555 = vsel %vm219, %v552, -inf
    %556 = vmax.xlane.f32.xlu0 %v555
    %v557 = vpop.xlane.xlu0 %556
    %v558 = vsub.f32 %v552, %v557
    %v559 = vmul.f32 %v558, 1.442695
    %v560 = vpow.pop %v559
    %v561 = vsel %vm219, %v560, 0.0
    %562 = vadd.xlane.f32.xlu0 %v561
    %v563 = vpop.xlane.xlu0 %562
    %v564 = vrcp.pop %v563
    %v565 = vmul.f32 %v560, %v564
    %566 = vrot.lane.b32.xlu0 %v135, 64
    %v567 = vpop.permute.xlu0 %566
    %v570 = vsel %vm219, %v565, 0
    %572 = vmatprep.subr.mxu0 0.0
    %573 = vmatpush1.msra.mxu0 %v567
    %574 = vmatprep.subr.mxu0 0.0
    %575 = vmatpush1.msra.mxu0 0.0
    %576 = vmatprep.subr.mxu0 0.0
    %577 = vmatpush1.msra.mxu0 0.0
    %578 = vmatprep.subr.mxu0 0.0
    %579 = vmatpush1.msra.mxu0 0.0
    %580 = vmatprep.subr.mxu0 0.0
    %581 = vmatpush1.msra.mxu0 0.0
    %582 = vmatprep.subr.mxu0 0.0
    %583 = vmatpush1.msra.mxu0 0.0
    %584 = vmatprep.subr.mxu0 0.0
    %585 = vmatpush1.msra.mxu0 0.0
    %586 = vmatprep.subr.mxu0 0.0
    %587 = vmatpush1.msra.mxu0 0.0
    %588 = vmatprep.subr.mxu0 0.0
    %589 = vmatpush1.msra.mxu0 0.0
    %590 = vmatprep.subr.mxu0 0.0
    %591 = vmatpush1.msra.mxu0 0.0
    %592 = vmatprep.subr.mxu0 0.0
    %593 = vmatpush1.msra.mxu0 0.0
    %594 = vmatprep.subr.mxu0 0.0
    %595 = vmatpush1.msra.mxu0 0.0
    %596 = vmatprep.subr.mxu0 0.0
    %597 = vmatpush1.msra.mxu0 0.0
    %598 = vmatprep.subr.mxu0 0.0
    %599 = vmatpush1.msra.mxu0 0.0
    %600 = vmatprep.subr.mxu0 0.0
    %601 = vmatpush1.msra.mxu0 0.0
    %602 = vmatprep.subr.mxu0 0.0
    %603 = vmatpush1.msra.mxu0 0.0
    %604 = vmatprep.subr.mxu0 0.0
    %605 = vmatpush1.msra.mxu0 0.0
    %606 = vmatprep.subr.mxu0 0.0
    %607 = vmatpush1.msra.mxu0 0.0
    %608 = vmatprep.subr.mxu0 0.0
    %609 = vmatpush1.msra.mxu0 0.0
    %610 = vmatprep.subr.mxu0 0.0
    %611 = vmatpush1.msra.mxu0 0.0
    %612 = vmatprep.subr.mxu0 0.0
    %613 = vmatpush1.msra.mxu0 0.0
    %614 = vmatprep.subr.mxu0 0.0
    %615 = vmatpush1.msra.mxu0 0.0
    %616 = vmatprep.subr.mxu0 0.0
    %617 = vmatpush1.msra.mxu0 0.0
    %618 = vmatprep.subr.mxu0 0.0
    %619 = vmatpush1.msra.mxu0 0.0
    %620 = vmatprep.subr.mxu0 0.0
    %621 = vmatpush1.msra.mxu0 0.0
    %622 = vmatprep.subr.mxu0 0.0
    %623 = vmatpush1.msra.mxu0 0.0
    %624 = vmatprep.subr.mxu0 0.0
    %625 = vmatpush1.msra.mxu0 0.0
    %626 = vmatprep.subr.mxu0 0.0
    %627 = vmatpush1.msra.mxu0 0.0
    %628 = vmatprep.subr.mxu0 0.0
    %629 = vmatpush1.msra.mxu0 0.0
    %630 = vmatprep.subr.mxu0 0.0
    %631 = vmatpush1.msra.mxu0 0.0
    %632 = vmatprep.subr.mxu0 0.0
    %633 = vmatpush1.msra.mxu0 0.0
    %634 = vmatprep.subr.mxu0 0.0
    %635 = vmatpush1.msra.mxu0 0.0
    %636 = vmatprep.mubr.f32.mxu0 0.0
    %637 = vmatmul.mubr.f32.gmra.mrb[0].mxu0 %v570
    %v638 = vpop.f32.mrb[0].mxu0
    %v639 = vadd.f32 0.0, %v638
    %v640 = vpop.f32.mrb[0].mxu0
    %641 = vdwg.mxu0
    %642 = vrot.lane.b32.xlu0 %v139, 112
    %v643 = vpop.permute.xlu0 %642
    %644 = vrot.lane.b32.xlu0 %v135, 80
    %v645 = vpop.permute.xlu0 %644
    %v646 = vsel %vm143, %v643, 0
    %v648 = vsel %vm143, %v645, 0
    %650 = vmatprep.subr.mxu0 0.0
    %651 = vmatpush1.xpose.msra.mxu0 %v648
    %652 = vmatprep.subr.mxu0 0.0
    %653 = vmatpush1.xpose.msra.mxu0 0.0
    %654 = vmatprep.subr.mxu0 0.0
    %655 = vmatpush1.xpose.msra.mxu0 0.0
    %656 = vmatprep.subr.mxu0 0.0
    %657 = vmatpush1.xpose.msra.mxu0 0.0
    %658 = vmatprep.subr.mxu0 0.0
    %659 = vmatpush1.xpose.msra.mxu0 0.0
    %660 = vmatprep.subr.mxu0 0.0
    %661 = vmatpush1.xpose.msra.mxu0 0.0
    %662 = vmatprep.subr.mxu0 0.0
    %663 = vmatpush1.xpose.msra.mxu0 0.0
    %664 = vmatprep.subr.mxu0 0.0
    %665 = vmatpush1.xpose.msra.mxu0 0.0
    %666 = vmatprep.subr.mxu0 0.0
    %667 = vmatpush1.xpose.msra.mxu0 0.0
    %668 = vmatprep.subr.mxu0 0.0
    %669 = vmatpush1.xpose.msra.mxu0 0.0
    %670 = vmatprep.subr.mxu0 0.0
    %671 = vmatpush1.xpose.msra.mxu0 0.0
    %672 = vmatprep.subr.mxu0 0.0
    %673 = vmatpush1.xpose.msra.mxu0 0.0
    %674 = vmatprep.subr.mxu0 0.0
    %675 = vmatpush1.xpose.msra.mxu0 0.0
    %676 = vmatprep.subr.mxu0 0.0
    %677 = vmatpush1.xpose.msra.mxu0 0.0
    %678 = vmatprep.subr.mxu0 0.0
    %679 = vmatpush1.xpose.msra.mxu0 0.0
    %680 = vmatprep.subr.mxu0 0.0
    %681 = vmatpush1.xpose.msra.mxu0 0.0
    %682 = vmatprep.subr.mxu0 0.0
    %683 = vmatpush1.xpose.msra.mxu0 0.0
    %684 = vmatprep.subr.mxu0 0.0
    %685 = vmatpush1.xpose.msra.mxu0 0.0
    %686 = vmatprep.subr.mxu0 0.0
    %687 = vmatpush1.xpose.msra.mxu0 0.0
    %688 = vmatprep.subr.mxu0 0.0
    %689 = vmatpush1.xpose.msra.mxu0 0.0
    %690 = vmatprep.subr.mxu0 0.0
    %691 = vmatpush1.xpose.msra.mxu0 0.0
    %692 = vmatprep.subr.mxu0 0.0
    %693 = vmatpush1.xpose.msra.mxu0 0.0
    %694 = vmatprep.subr.mxu0 0.0
    %695 = vmatpush1.xpose.msra.mxu0 0.0
    %696 = vmatprep.subr.mxu0 0.0
    %697 = vmatpush1.xpose.msra.mxu0 0.0
    %698 = vmatprep.subr.mxu0 0.0
    %699 = vmatpush1.xpose.msra.mxu0 0.0
    %700 = vmatprep.subr.mxu0 0.0
    %701 = vmatpush1.xpose.msra.mxu0 0.0
    %702 = vmatprep.subr.mxu0 0.0
    %703 = vmatpush1.xpose.msra.mxu0 0.0
    %704 = vmatprep.subr.mxu0 0.0
    %705 = vmatpush1.xpose.msra.mxu0 0.0
    %706 = vmatprep.subr.mxu0 0.0
    %707 = vmatpush1.xpose.msra.mxu0 0.0
    %708 = vmatprep.subr.mxu0 0.0
    %709 = vmatpush1.xpose.msra.mxu0 0.0
    %710 = vmatprep.subr.mxu0 0.0
    %711 = vmatpush1.xpose.msra.mxu0 0.0
    %712 = vmatprep.subr.mxu0 0.0
    %713 = vmatpush1.xpose.msra.mxu0 0.0
    %714 = vmatprep.mubr.f32.mxu0 0.0
    %715 = vmatmul.mubr.f32.gmra.mrb[0].mxu0 %v646
    %v716 = vpop.f32.mrb[0].mxu0
    %v717 = vadd.f32 0.0, %v716
    %v718 = vpop.f32.mrb[0].mxu0
    %719 = vdwg.mxu0
    %v720 = vsel %vm219, %v717, -inf
    %721 = vmax.xlane.f32.xlu0 %v720
    %v722 = vpop.xlane.xlu0 %721
    %v723 = vsub.f32 %v717, %v722
    %v724 = vmul.f32 %v723, 1.442695
    %v725 = vpow.pop %v724
    %v726 = vsel %vm219, %v725, 0.0
    %727 = vadd.xlane.f32.xlu0 %v726
    %v728 = vpop.xlane.xlu0 %727
    %v729 = vrcp.pop %v728
    %v730 = vmul.f32 %v725, %v729
    %731 = vrot.lane.b32.xlu0 %v135, 48
    %v732 = vpop.permute.xlu0 %731
    %v735 = vsel %vm219, %v730, 0
    %737 = vmatprep.subr.mxu0 0.0
    %738 = vmatpush1.msra.mxu0 %v732
    %739 = vmatprep.subr.mxu0 0.0
    %740 = vmatpush1.msra.mxu0 0.0
    %741 = vmatprep.subr.mxu0 0.0
    %742 = vmatpush1.msra.mxu0 0.0
    %743 = vmatprep.subr.mxu0 0.0
    %744 = vmatpush1.msra.mxu0 0.0
    %745 = vmatprep.subr.mxu0 0.0
    %746 = vmatpush1.msra.mxu0 0.0
    %747 = vmatprep.subr.mxu0 0.0
    %748 = vmatpush1.msra.mxu0 0.0
    %749 = vmatprep.subr.mxu0 0.0
    %750 = vmatpush1.msra.mxu0 0.0
    %751 = vmatprep.subr.mxu0 0.0
    %752 = vmatpush1.msra.mxu0 0.0
    %753 = vmatprep.subr.mxu0 0.0
    %754 = vmatpush1.msra.mxu0 0.0
    %755 = vmatprep.subr.mxu0 0.0
    %756 = vmatpush1.msra.mxu0 0.0
    %757 = vmatprep.subr.mxu0 0.0
    %758 = vmatpush1.msra.mxu0 0.0
    %759 = vmatprep.subr.mxu0 0.0
    %760 = vmatpush1.msra.mxu0 0.0
    %761 = vmatprep.subr.mxu0 0.0
    %762 = vmatpush1.msra.mxu0 0.0
    %763 = vmatprep.subr.mxu0 0.0
    %764 = vmatpush1.msra.mxu0 0.0
    %765 = vmatprep.subr.mxu0 0.0
    %766 = vmatpush1.msra.mxu0 0.0
    %767 = vmatprep.subr.mxu0 0.0
    %768 = vmatpush1.msra.mxu0 0.0
    %769 = vmatprep.subr.mxu0 0.0
    %770 = vmatpush1.msra.mxu0 0.0
    %771 = vmatprep.subr.mxu0 0.0
    %772 = vmatpush1.msra.mxu0 0.0
    %773 = vmatprep.subr.mxu0 0.0
    %774 = vmatpush1.msra.mxu0 0.0
    %775 = vmatprep.subr.mxu0 0.0
    %776 = vmatpush1.msra.mxu0 0.0
    %777 = vmatprep.subr.mxu0 0.0
    %778 = vmatpush1.msra.mxu0 0.0
    %779 = vmatprep.subr.mxu0 0.0
    %780 = vmatpush1.msra.mxu0 0.0
    %781 = vmatprep.subr.mxu0 0.0
    %782 = vmatpush1.msra.mxu0 0.0
    %783 = vmatprep.subr.mxu0 0.0
    %784 = vmatpush1.msra.mxu0 0.0
    %785 = vmatprep.subr.mxu0 0.0
    %786 = vmatpush1.msra.mxu0 0.0
    %787 = vmatprep.subr.mxu0 0.0
    %788 = vmatpush1.msra.mxu0 0.0
    %789 = vmatprep.subr.mxu0 0.0
    %790 = vmatpush1.msra.mxu0 0.0
    %791 = vmatprep.subr.mxu0 0.0
    %792 = vmatpush1.msra.mxu0 0.0
    %793 = vmatprep.subr.mxu0 0.0
    %794 = vmatpush1.msra.mxu0 0.0
    %795 = vmatprep.subr.mxu0 0.0
    %796 = vmatpush1.msra.mxu0 0.0
    %797 = vmatprep.subr.mxu0 0.0
    %798 = vmatpush1.msra.mxu0 0.0
    %799 = vmatprep.subr.mxu0 0.0
    %800 = vmatpush1.msra.mxu0 0.0
    %801 = vmatprep.mubr.f32.mxu0 0.0
    %802 = vmatmul.mubr.f32.gmra.mrb[0].mxu0 %v735
    %v803 = vpop.f32.mrb[0].mxu0
    %v804 = vadd.f32 0.0, %v803
    %v805 = vpop.f32.mrb[0].mxu0
    %806 = vdwg.mxu0
    %808 = vrot.lane.b32.xlu0 %v804, 16
    %v809 = vpop.permute.xlu0 %808
    %v811 = vsel %vm143, %v639, %v809
    %812 = vst.msk [vmem:[#allocation7] sm:$0xff] %vm56, %v476
    %s813 = scalar_lea.vmem [#allocation7], 8
    %814 = vst.msk [vmem:[%s813] sm:$0xff] %vm56, %v811
    // Predicated region
    $region22: #{tpu_custom_call.1} parent=1 // pred_check
      _
    $region23: #{tpu_custom_call.1} parent=1 // pred_check_branch
      %816 = sbr.rel (0) target = $region25
    $region24: #{tpu_custom_call.1} parent=1 // pred_region
      %s818 = ssub.s32 256, 256
      %819 = vsyncadd [#allocation4], %s818
      %s820 = sshll.u32 [#allocation7], 4
      %s821 = int_to_ptr.vmem [resolvable:$true] %s820
      %826 = dma.vmem_to_hbm [thread:$0]  %s821, 256, %s3, [#allocation4], 128, 128, 8
    $region25: #{tpu_custom_call.1} parent=1 // pred_fallthru
      _
    // Predicated region
    $region26: #{tpu_custom_call.1} parent=1 // pred_check
      _
    $region27: #{tpu_custom_call.1} parent=1 // pred_check_branch
      %828 = sbr.rel (0) target = $region29
    $region28: #{tpu_custom_call.1} parent=1 // pred_region
      %829 = dma.done [#allocation4], 256
    $region29: #{tpu_custom_call.1} parent=1 // pred_fallthru
      _
    %830 = vsyncpa [#allocation3], 1
    %831 = vsyncpa [#allocation6], 1
    %832 = vsyncpa [#allocation4], 1

</llo_original>
